<compile_context>
chip_gen: v7x
topology: tpu7x:2x2x1
jax: 0.10.0
libtpu: 0.0.40
codegen_flags: <defaults>
</compile_context>

<pallas_src>
import functools

import jax
import jax.numpy as jnp
from jax.experimental import pallas as pl
from jax.experimental.pallas import tpu as pltpu


def _attr_cosmetics_kernel(
    cat_ref,     # (Bt, L, D)  bf16  cat_embedding(cats)
    brand_ref,   # (Bt, L, D)  bf16  brand_embedding(brands)
    mask_ref,    # (Bt, 1, L)  f32   1.0 = valid, 0.0 = pad
    w3c_ref,     # (D, D)      bf16  w_3[:D]
    w3b_ref,     # (D, D)      bf16  w_3[D:]
    wqkv_ref,    # (D, 3D)     bf16  [wq | wk | wv]
    bqkv_ref,    # (1, 3D)     f32
    wo_ref,      # (D, D)      bf16
    bo_ref,      # (1, D)      f32
    ln_g_ref,    # (1, D)      f32
    ln_b_ref,    # (1, D)      f32
    w4_ref,      # (D, out_pad) bf16 (zero-padded lanes)
    out_ref,     # (Bt, L, out_pad) bf16
    *, num_heads):
    Bt, L, D = cat_ref.shape
    H = num_heads
    hd = D // H
    M = Bt * L
    f32 = jnp.float32
    bf16 = jnp.bfloat16

    # attr_feat = concat([cat_feat, brand_feat], -1) @ w_3
    #           = cat_feat @ w_3[:D] + brand_feat @ w_3[D:]    (tokens flattened)
    x = (jnp.dot(cat_ref[...].reshape(M, D), w3c_ref[...],
                 preferred_element_type=f32)
         + jnp.dot(brand_ref[...].reshape(M, D), w3b_ref[...],
                   preferred_element_type=f32))                         # (M, D) f32

    # Fused Q/K/V projection: one MXU weight push instead of three.
    qkv = jnp.dot(x.astype(bf16), wqkv_ref[...],
                  preferred_element_type=f32) + bqkv_ref[0]             # (M, 3D) f32
    qkv = qkv.reshape(Bt, L, 3 * D).astype(bf16)

    # Additive key-padding mask, broadcast once (hoisted out of the head loop).
    neg = (1.0 - mask_ref[...]) * (-1e9)                                # (Bt, 1, L)
    neg_b = jnp.broadcast_to(neg, (Bt, L, L))                           # (Bt, L, L)

    scale = 1.0 / (float(hd) ** 0.5)

    # Per-head attention (batched over Bt). Per-head contexts are gathered and
    # the output projection is done ONCE as (M,D)@(D,D) — no per-head K=hd
    # matmuls, no per-head wo weight pushes, no f32 accumulator.
    ctx_heads = []
    for h in range(H):                      # static unrolled loop over heads
        lo = h * hd
        qh = qkv[:, :, lo:lo + hd]                                      # (Bt, L, hd)
        kh = qkv[:, :, D + lo:D + lo + hd]
        vh = qkv[:, :, 2 * D + lo:2 * D + lo + hd]
        s = jnp.einsum('bqd,bkd->bqk', qh, kh,
                       preferred_element_type=f32) * scale + neg_b      # (Bt, L, L)
        s = s - s.max(axis=-1, keepdims=True)
        p = jnp.exp(s)
        p = p * pl.reciprocal(p.sum(axis=-1, keepdims=True), approx=True)
        ctx_heads.append(
            jnp.einsum('bqk,bkd->bqd', p.astype(bf16), vh,
                       preferred_element_type=f32))                     # (Bt, L, hd)
    ctx = jnp.concatenate(ctx_heads, axis=-1).reshape(M, D)             # (M, D) f32

    attn = jnp.dot(ctx.astype(bf16), wo_ref[...],
                   preferred_element_type=f32) + bo_ref[0]              # (M, D) f32

    # Residual + LayerNorm (dropout=0.2 disabled: eval mode) — f32 math.
    y = x + attn
    mu = y.mean(axis=-1, keepdims=True)
    var = ((y - mu) ** 2).mean(axis=-1, keepdims=True)
    y = (y - mu) * jax.lax.rsqrt(var + 1e-5)
    y = y * ln_g_ref[0] + ln_b_ref[0]

    # attr_feat @ w_4 ; tanh   (w_4 zero-padded -> lane-dense 128-wide store)
    out = jnp.tanh(jnp.dot(y.astype(bf16), w4_ref[...],
                           preferred_element_type=f32))
    out_ref[...] = out.reshape(Bt, L, -1).astype(out_ref.dtype)


def _pick_batch_tile(B, L, *, target_tokens=1024, split_min_tokens=512):
    # Single TensorCore chips (v5e/v6e): one big tile (~1024 tokens) amortizes
    # the ~0.35us per-step overhead and fills MXU rows. Only split into >=2
    # grid steps (useful for v7x's 2 TCs via the "parallel" batch axis) when
    # each step still keeps >= split_min_tokens tokens.
    bt = max(1, min(B, target_tokens // max(L, 1)))
    if B * L >= 2 * split_min_tokens:
        bt = min(bt, max(1, B // 2))
    return bt


def attribute_cosmetics_forward(params, cats, brands, masks, *, num_heads):
    """cats, brands: int32 [B, L]; masks: float [B, L] (1.0 valid / 0.0 pad)."""
    B, L = cats.shape
    D = params["cat_embedding"].shape[1]
    out_dim = params["w_4"].shape[1]
    out_pad = ((out_dim + 127) // 128) * 128

    # Embedding lookups (gather) kept as JAX glue; tables cast to bf16 so the
    # kernel's dominant activation input is half-width.
    # TODO(synk): gather embedding rows in-kernel at production batch sizes.
    cat_feat = jnp.take(params["cat_embedding"].astype(jnp.bfloat16),
                        cats, axis=0)                                   # [B, L, D]
    brand_feat = jnp.take(params["brand_embedding"].astype(jnp.bfloat16),
                          brands, axis=0)
    mask3 = masks.astype(jnp.float32).reshape(B, 1, L)

    # Pack weights: split w3, fused QKV, lane-padded w4 — all bf16 operands.
    w3 = params["w_3"].astype(jnp.bfloat16)
    w3c, w3b = w3[:D], w3[D:]
    wqkv = jnp.concatenate(
        [params["wq"], params["wk"], params["wv"]], axis=1).astype(jnp.bfloat16)
    bqkv = jnp.concatenate(
        [params["bq"], params["bk"], params["bv"]], axis=1).astype(jnp.float32)
    wo = params["wo"].astype(jnp.bfloat16)
    w4p = jnp.pad(params["w_4"],
                  ((0, 0), (0, out_pad - out_dim))).astype(jnp.bfloat16)

    # Pad L to a sublane multiple so in-kernel (Bt*L, .) reshapes are
    # tile-preserving; padded key positions are masked, padded rows discarded.
    Lp = ((L + 7) // 8) * 8
    if Lp != L:
        cat_feat = jnp.pad(cat_feat, ((0, 0), (0, Lp - L), (0, 0)))
        brand_feat = jnp.pad(brand_feat, ((0, 0), (0, Lp - L), (0, 0)))
        mask3 = jnp.pad(mask3, ((0, 0), (0, 0), (0, Lp - L)))

    Bt = _pick_batch_tile(B, Lp)
    Bp = pl.cdiv(B, Bt) * Bt
    if Bp != B:  # pad batch so the grid divides evenly; padded rows discarded
        cat_feat = jnp.pad(cat_feat, ((0, Bp - B), (0, 0), (0, 0)))
        brand_feat = jnp.pad(brand_feat, ((0, Bp - B), (0, 0), (0, 0)))
        mask3 = jnp.pad(mask3, ((0, Bp - B), (0, 0), (0, 0)))

    kernel = functools.partial(_attr_cosmetics_kernel, num_heads=num_heads)
    full = lambda shape: pl.BlockSpec(shape, lambda b: (0,) * len(shape))

    out = pl.pallas_call(
        kernel,
        out_shape=jax.ShapeDtypeStruct((Bp, Lp, out_pad), jnp.bfloat16),
        grid_spec=pltpu.PrefetchScalarGridSpec(
            num_scalar_prefetch=0,
            grid=(Bp // Bt,),
            in_specs=[
                pl.BlockSpec((Bt, Lp, D), lambda b: (b, 0, 0)),   # cat_feat
                pl.BlockSpec((Bt, Lp, D), lambda b: (b, 0, 0)),   # brand_feat
                pl.BlockSpec((Bt, 1, Lp), lambda b: (b, 0, 0)),   # mask
                full((D, D)), full((D, D)),                       # w3[:D], w3[D:]
                full((D, 3 * D)), full((1, 3 * D)),               # wqkv, bqkv
                full((D, D)), full((1, D)),                       # wo, bo
                full((1, D)), full((1, D)),                       # ln gamma, beta
                full((D, out_pad)),                               # w4 (padded)
            ],
            out_specs=pl.BlockSpec((Bt, Lp, out_pad), lambda b: (b, 0, 0)),
        ),
        compiler_params=pltpu.CompilerParams(
            dimension_semantics=("parallel",)),
    )(cat_feat, brand_feat, mask3, w3c, w3b, wqkv, bqkv, wo,
      params["bo"].astype(jnp.float32),
      params["ln_gamma"].astype(jnp.float32),
      params["ln_beta"].astype(jnp.float32), w4p)

    return out[:B, :L, :out_dim]


def init_params(key, *, attribute_dim, n_cats, n_brands):
    D = attribute_dim
    ks = jax.random.split(key, 12)
    n = lambda k, shape: (jax.random.normal(k, shape, jnp.float32) * 0.02)
    return {
        "cat_embedding": n(ks[0], (n_cats, D)),
        "brand_embedding": n(ks[1], (n_brands, D)),
        "w_3": n(ks[2], (2 * D, D)),
        "w_4": n(ks[3], (D, 100)),
        "wq": n(ks[4], (D, D)), "bq": n(ks[5], (1, D)),
        "wk": n(ks[6], (D, D)), "bk": n(ks[7], (1, D)),
        "wv": n(ks[8], (D, D)), "bv": n(ks[9], (1, D)),
        "wo": n(ks[10], (D, D)), "bo": n(ks[11], (1, D)),
        "ln_gamma": jnp.ones((1, D), jnp.float32),
        "ln_beta": jnp.zeros((1, D), jnp.float32),
        # w_1 / w_2 from __init__ are never used in forward; omitted.
    }


if __name__ == "__main__":
    B, L, D, H = 2, 8, 32, 4
    N_CATS, N_BRANDS = 20, 30

    key = jax.random.PRNGKey(0)
    k_par, k_cat, k_brand = jax.random.split(key, 3)

    params = init_params(k_par, attribute_dim=D, n_cats=N_CATS, n_brands=N_BRANDS)

    cats = jax.random.randint(k_cat, (B, L), 0, N_CATS, dtype=jnp.int32)
    brands = jax.random.randint(k_brand, (B, L), 0, N_BRANDS, dtype=jnp.int32)
    # valid for first 6 positions, padded for the last 2
    masks = (jnp.arange(L)[None, :] < 6).astype(jnp.float32).repeat(B, axis=0)

    out = attribute_cosmetics_forward(params, cats, brands, masks, num_heads=H)
    jax.block_until_ready(out)
    assert out.shape == (B, L, 100)
    print("KERNEL_OK")
</pallas_src>

<mosaic_0001>
module attributes {stable_mosaic.version = 11 : i64} {
  func.func @_attr_cosmetics_kernel(%arg0: i32, %arg1: memref<2x8x32xbf16, #tpu.memory_space<vmem>>, %arg2: memref<2x8x32xbf16, #tpu.memory_space<vmem>>, %arg3: memref<2x1x8xf32, #tpu.memory_space<vmem>>, %arg4: memref<32x32xbf16, #tpu.memory_space<vmem>>, %arg5: memref<32x32xbf16, #tpu.memory_space<vmem>>, %arg6: memref<32x96xbf16, #tpu.memory_space<vmem>>, %arg7: memref<1x96xf32, #tpu.memory_space<vmem>>, %arg8: memref<32x32xbf16, #tpu.memory_space<vmem>>, %arg9: memref<1x32xf32, #tpu.memory_space<vmem>>, %arg10: memref<1x32xf32, #tpu.memory_space<vmem>>, %arg11: memref<1x32xf32, #tpu.memory_space<vmem>>, %arg12: memref<32x128xbf16, #tpu.memory_space<vmem>>, %arg13: memref<2x8x128xbf16, #tpu.memory_space<vmem>>) attributes {dimension_semantics = [#tpu.dimension_semantics<parallel>], iteration_bounds = array<i64: 1>, scalar_prefetch = 0 : i64, scratch_operands = 0 : i64, tpu.core_type = #tpu.core_type<tc>, window_params = [{transform_indices = @transform_0, window_bounds = array<i64: 2, 8, 32>}, {transform_indices = @transform_1, window_bounds = array<i64: 2, 8, 32>}, {transform_indices = @transform_2, window_bounds = array<i64: 2, 1, 8>}, {pipeline_mode = #tpu.pipeline_mode<synchronous>, transform_indices = @transform_3, window_bounds = array<i64: 32, 32>}, {pipeline_mode = #tpu.pipeline_mode<synchronous>, transform_indices = @transform_4, window_bounds = array<i64: 32, 32>}, {pipeline_mode = #tpu.pipeline_mode<synchronous>, transform_indices = @transform_5, window_bounds = array<i64: 32, 96>}, {pipeline_mode = #tpu.pipeline_mode<synchronous>, transform_indices = @transform_6, window_bounds = array<i64: 1, 96>}, {pipeline_mode = #tpu.pipeline_mode<synchronous>, transform_indices = @transform_7, window_bounds = array<i64: 32, 32>}, {pipeline_mode = #tpu.pipeline_mode<synchronous>, transform_indices = @transform_8, window_bounds = array<i64: 1, 32>}, {pipeline_mode = #tpu.pipeline_mode<synchronous>, transform_indices = @transform_9, window_bounds = array<i64: 1, 32>}, {pipeline_mode = #tpu.pipeline_mode<synchronous>, transform_indices = @transform_10, window_bounds = array<i64: 1, 32>}, {pipeline_mode = #tpu.pipeline_mode<synchronous>, transform_indices = @transform_11, window_bounds = array<i64: 32, 128>}, {transform_indices = @transform_12, window_bounds = array<i64: 2, 8, 128>}]} {
    %c0 = arith.constant 0 : index
    %c0_0 = arith.constant 0 : index
    %c0_1 = arith.constant 0 : index
    %0 = vector.load %arg1[%c0, %c0_0, %c0_1] : memref<2x8x32xbf16, #tpu.memory_space<vmem>>, vector<2x8x32xbf16>
    %1 = vector.shape_cast %0 : vector<2x8x32xbf16> to vector<16x32xbf16>
    %c0_2 = arith.constant 0 : index
    %c0_3 = arith.constant 0 : index
    %2 = vector.load %arg4[%c0_2, %c0_3] : memref<32x32xbf16, #tpu.memory_space<vmem>>, vector<32x32xbf16>
    %cst = arith.constant dense<0.000000e+00> : vector<16x32xf32>
    %3 = tpu.matmul %1, %2, %cst {dimension_numbers = #tpu.dot_dimension_numbers<[1], [0], [0], [1], [0, 0, 1, 1], [], []>} : vector<16x32xbf16>, vector<32x32xbf16>, vector<16x32xf32> -> vector<16x32xf32>
    %c0_4 = arith.constant 0 : index
    %c0_5 = arith.constant 0 : index
    %c0_6 = arith.constant 0 : index
    %4 = vector.load %arg2[%c0_4, %c0_5, %c0_6] : memref<2x8x32xbf16, #tpu.memory_space<vmem>>, vector<2x8x32xbf16>
    %5 = vector.shape_cast %4 : vector<2x8x32xbf16> to vector<16x32xbf16>
    %c0_7 = arith.constant 0 : index
    %c0_8 = arith.constant 0 : index
    %6 = vector.load %arg5[%c0_7, %c0_8] : memref<32x32xbf16, #tpu.memory_space<vmem>>, vector<32x32xbf16>
    %cst_9 = arith.constant dense<0.000000e+00> : vector<16x32xf32>
    %7 = tpu.matmul %5, %6, %cst_9 {dimension_numbers = #tpu.dot_dimension_numbers<[1], [0], [0], [1], [0, 0, 1, 1], [], []>} : vector<16x32xbf16>, vector<32x32xbf16>, vector<16x32xf32> -> vector<16x32xf32>
    %8 = arith.addf %3, %7 : vector<16x32xf32>
    %9 = arith.truncf %8 : vector<16x32xf32> to vector<16x32xbf16>
    %c0_10 = arith.constant 0 : index
    %c0_11 = arith.constant 0 : index
    %10 = vector.load %arg6[%c0_10, %c0_11] : memref<32x96xbf16, #tpu.memory_space<vmem>>, vector<32x96xbf16>
    %cst_12 = arith.constant dense<0.000000e+00> : vector<16x96xf32>
    %11 = tpu.matmul %9, %10, %cst_12 {dimension_numbers = #tpu.dot_dimension_numbers<[1], [0], [0], [1], [0, 0, 1, 1], [], []>} : vector<16x32xbf16>, vector<32x96xbf16>, vector<16x96xf32> -> vector<16x96xf32>
    %c0_13 = arith.constant 0 : index
    %c0_14 = arith.constant 0 : index
    %12 = vector.load %arg7[%c0_13, %c0_14] : memref<1x96xf32, #tpu.memory_space<vmem>>, vector<1x96xf32>
    %13 = vector.shape_cast %12 : vector<1x96xf32> to vector<96xf32>
    %14 = vector.shape_cast %13 : vector<96xf32> to vector<1x96xf32>
    %15 = vector.broadcast %14 : vector<1x96xf32> to vector<16x96xf32>
    %16 = arith.addf %11, %15 : vector<16x96xf32>
    %17 = vector.shape_cast %16 : vector<16x96xf32> to vector<2x8x96xf32>
    %18 = arith.truncf %17 : vector<2x8x96xf32> to vector<2x8x96xbf16>
    %c0_15 = arith.constant 0 : index
    %c0_16 = arith.constant 0 : index
    %c0_17 = arith.constant 0 : index
    %19 = vector.load %arg3[%c0_15, %c0_16, %c0_17] : memref<2x1x8xf32, #tpu.memory_space<vmem>>, vector<2x1x8xf32>
    %cst_18 = arith.constant 1.000000e+00 : f32
    %20 = vector.broadcast %cst_18 : f32 to vector<2x1x8xf32>
    %21 = arith.subf %20, %19 : vector<2x1x8xf32>
    %cst_19 = arith.constant -1.000000e+09 : f32
    %22 = vector.broadcast %cst_19 : f32 to vector<2x1x8xf32>
    %23 = arith.mulf %21, %22 : vector<2x1x8xf32>
    %24 = vector.shape_cast %23 : vector<2x1x8xf32> to vector<2x1x8xf32>
    %25 = vector.broadcast %24 : vector<2x1x8xf32> to vector<2x8x8xf32>
    %26 = vector.extract_strided_slice %18 {offsets = [0, 0, 0], sizes = [2, 8, 8], strides = [1, 1, 1]} : vector<2x8x96xbf16> to vector<2x8x8xbf16>
    %27 = vector.extract_strided_slice %18 {offsets = [0, 0, 32], sizes = [2, 8, 8], strides = [1, 1, 1]} : vector<2x8x96xbf16> to vector<2x8x8xbf16>
    %28 = vector.extract_strided_slice %18 {offsets = [0, 0, 64], sizes = [2, 8, 8], strides = [1, 1, 1]} : vector<2x8x96xbf16> to vector<2x8x8xbf16>
    "tpu.trace_start"() <{level = 10 : i32, message = "bqd,bkd->bqk"}> : () -> ()
    %cst_20 = arith.constant dense<0.000000e+00> : vector<2x8x8xf32>
    %29 = tpu.matmul %26, %27, %cst_20 {dimension_numbers = #tpu.dot_dimension_numbers<[2], [2], [1], [1], [0, 0, 0, 1, 1, 1], [0], [0]>} : vector<2x8x8xbf16>, vector<2x8x8xbf16>, vector<2x8x8xf32> -> vector<2x8x8xf32>
    "tpu.trace_stop"() : () -> ()
    %cst_21 = arith.constant 0.353553385 : f32
    %30 = vector.broadcast %cst_21 : f32 to vector<2x8x8xf32>
    %31 = arith.mulf %29, %30 : vector<2x8x8xf32>
    %32 = arith.addf %31, %25 : vector<2x8x8xf32>
    %cst_22 = arith.constant dense<0xFF800000> : vector<2x8xf32>
    %33 = vector.multi_reduction <maximumf>, %32, %cst_22 [2] : vector<2x8x8xf32> to vector<2x8xf32>
    %34 = vector.shape_cast %33 : vector<2x8xf32> to vector<2x8x1xf32>
    %35 = vector.broadcast %34 : vector<2x8x1xf32> to vector<2x8x8xf32>
    %36 = arith.subf %32, %35 : vector<2x8x8xf32>
    %37 = math.exp %36 : vector<2x8x8xf32>
    %cst_23 = arith.constant dense<0.000000e+00> : vector<2x8xf32>
    %38 = vector.multi_reduction <add>, %37, %cst_23 [2] : vector<2x8x8xf32> to vector<2x8xf32>
    %39 = vector.shape_cast %38 : vector<2x8xf32> to vector<2x8x1xf32>
    %40 = tpu.reciprocal %39 {approx = true} : vector<2x8x1xf32> -> vector<2x8x1xf32>
    %41 = vector.broadcast %40 : vector<2x8x1xf32> to vector<2x8x8xf32>
    %42 = arith.mulf %37, %41 : vector<2x8x8xf32>
    %43 = arith.truncf %42 : vector<2x8x8xf32> to vector<2x8x8xbf16>
    "tpu.trace_start"() <{level = 10 : i32, message = "bqk,bkd->bqd"}> : () -> ()
    %cst_24 = arith.constant dense<0.000000e+00> : vector<2x8x8xf32>
    %44 = tpu.matmul %43, %28, %cst_24 {dimension_numbers = #tpu.dot_dimension_numbers<[2], [1], [1], [2], [0, 0, 0, 1, 1, 2], [0], [0]>} : vector<2x8x8xbf16>, vector<2x8x8xbf16>, vector<2x8x8xf32> -> vector<2x8x8xf32>
    "tpu.trace_stop"() : () -> ()
    %45 = vector.extract_strided_slice %18 {offsets = [0, 0, 8], sizes = [2, 8, 8], strides = [1, 1, 1]} : vector<2x8x96xbf16> to vector<2x8x8xbf16>
    %46 = vector.extract_strided_slice %18 {offsets = [0, 0, 40], sizes = [2, 8, 8], strides = [1, 1, 1]} : vector<2x8x96xbf16> to vector<2x8x8xbf16>
    %47 = vector.extract_strided_slice %18 {offsets = [0, 0, 72], sizes = [2, 8, 8], strides = [1, 1, 1]} : vector<2x8x96xbf16> to vector<2x8x8xbf16>
    "tpu.trace_start"() <{level = 10 : i32, message = "bqd,bkd->bqk"}> : () -> ()
    %cst_25 = arith.constant dense<0.000000e+00> : vector<2x8x8xf32>
    %48 = tpu.matmul %45, %46, %cst_25 {dimension_numbers = #tpu.dot_dimension_numbers<[2], [2], [1], [1], [0, 0, 0, 1, 1, 1], [0], [0]>} : vector<2x8x8xbf16>, vector<2x8x8xbf16>, vector<2x8x8xf32> -> vector<2x8x8xf32>
    "tpu.trace_stop"() : () -> ()
    %cst_26 = arith.constant 0.353553385 : f32
    %49 = vector.broadcast %cst_26 : f32 to vector<2x8x8xf32>
    %50 = arith.mulf %48, %49 : vector<2x8x8xf32>
    %51 = arith.addf %50, %25 : vector<2x8x8xf32>
    %cst_27 = arith.constant dense<0xFF800000> : vector<2x8xf32>
    %52 = vector.multi_reduction <maximumf>, %51, %cst_27 [2] : vector<2x8x8xf32> to vector<2x8xf32>
    %53 = vector.shape_cast %52 : vector<2x8xf32> to vector<2x8x1xf32>
    %54 = vector.broadcast %53 : vector<2x8x1xf32> to vector<2x8x8xf32>
    %55 = arith.subf %51, %54 : vector<2x8x8xf32>
    %56 = math.exp %55 : vector<2x8x8xf32>
    %cst_28 = arith.constant dense<0.000000e+00> : vector<2x8xf32>
    %57 = vector.multi_reduction <add>, %56, %cst_28 [2] : vector<2x8x8xf32> to vector<2x8xf32>
    %58 = vector.shape_cast %57 : vector<2x8xf32> to vector<2x8x1xf32>
    %59 = tpu.reciprocal %58 {approx = true} : vector<2x8x1xf32> -> vector<2x8x1xf32>
    %60 = vector.broadcast %59 : vector<2x8x1xf32> to vector<2x8x8xf32>
    %61 = arith.mulf %56, %60 : vector<2x8x8xf32>
    %62 = arith.truncf %61 : vector<2x8x8xf32> to vector<2x8x8xbf16>
    "tpu.trace_start"() <{level = 10 : i32, message = "bqk,bkd->bqd"}> : () -> ()
    %cst_29 = arith.constant dense<0.000000e+00> : vector<2x8x8xf32>
    %63 = tpu.matmul %62, %47, %cst_29 {dimension_numbers = #tpu.dot_dimension_numbers<[2], [1], [1], [2], [0, 0, 0, 1, 1, 2], [0], [0]>} : vector<2x8x8xbf16>, vector<2x8x8xbf16>, vector<2x8x8xf32> -> vector<2x8x8xf32>
    "tpu.trace_stop"() : () -> ()
    %64 = vector.extract_strided_slice %18 {offsets = [0, 0, 16], sizes = [2, 8, 8], strides = [1, 1, 1]} : vector<2x8x96xbf16> to vector<2x8x8xbf16>
    %65 = vector.extract_strided_slice %18 {offsets = [0, 0, 48], sizes = [2, 8, 8], strides = [1, 1, 1]} : vector<2x8x96xbf16> to vector<2x8x8xbf16>
    %66 = vector.extract_strided_slice %18 {offsets = [0, 0, 80], sizes = [2, 8, 8], strides = [1, 1, 1]} : vector<2x8x96xbf16> to vector<2x8x8xbf16>
    "tpu.trace_start"() <{level = 10 : i32, message = "bqd,bkd->bqk"}> : () -> ()
    %cst_30 = arith.constant dense<0.000000e+00> : vector<2x8x8xf32>
    %67 = tpu.matmul %64, %65, %cst_30 {dimension_numbers = #tpu.dot_dimension_numbers<[2], [2], [1], [1], [0, 0, 0, 1, 1, 1], [0], [0]>} : vector<2x8x8xbf16>, vector<2x8x8xbf16>, vector<2x8x8xf32> -> vector<2x8x8xf32>
    "tpu.trace_stop"() : () -> ()
    %cst_31 = arith.constant 0.353553385 : f32
    %68 = vector.broadcast %cst_31 : f32 to vector<2x8x8xf32>
    %69 = arith.mulf %67, %68 : vector<2x8x8xf32>
    %70 = arith.addf %69, %25 : vector<2x8x8xf32>
    %cst_32 = arith.constant dense<0xFF800000> : vector<2x8xf32>
    %71 = vector.multi_reduction <maximumf>, %70, %cst_32 [2] : vector<2x8x8xf32> to vector<2x8xf32>
    %72 = vector.shape_cast %71 : vector<2x8xf32> to vector<2x8x1xf32>
    %73 = vector.broadcast %72 : vector<2x8x1xf32> to vector<2x8x8xf32>
    %74 = arith.subf %70, %73 : vector<2x8x8xf32>
    %75 = math.exp %74 : vector<2x8x8xf32>
    %cst_33 = arith.constant dense<0.000000e+00> : vector<2x8xf32>
    %76 = vector.multi_reduction <add>, %75, %cst_33 [2] : vector<2x8x8xf32> to vector<2x8xf32>
    %77 = vector.shape_cast %76 : vector<2x8xf32> to vector<2x8x1xf32>
    %78 = tpu.reciprocal %77 {approx = true} : vector<2x8x1xf32> -> vector<2x8x1xf32>
    %79 = vector.broadcast %78 : vector<2x8x1xf32> to vector<2x8x8xf32>
    %80 = arith.mulf %75, %79 : vector<2x8x8xf32>
    %81 = arith.truncf %80 : vector<2x8x8xf32> to vector<2x8x8xbf16>
    "tpu.trace_start"() <{level = 10 : i32, message = "bqk,bkd->bqd"}> : () -> ()
    %cst_34 = arith.constant dense<0.000000e+00> : vector<2x8x8xf32>
    %82 = tpu.matmul %81, %66, %cst_34 {dimension_numbers = #tpu.dot_dimension_numbers<[2], [1], [1], [2], [0, 0, 0, 1, 1, 2], [0], [0]>} : vector<2x8x8xbf16>, vector<2x8x8xbf16>, vector<2x8x8xf32> -> vector<2x8x8xf32>
    "tpu.trace_stop"() : () -> ()
    %83 = vector.extract_strided_slice %18 {offsets = [0, 0, 24], sizes = [2, 8, 8], strides = [1, 1, 1]} : vector<2x8x96xbf16> to vector<2x8x8xbf16>
    %84 = vector.extract_strided_slice %18 {offsets = [0, 0, 56], sizes = [2, 8, 8], strides = [1, 1, 1]} : vector<2x8x96xbf16> to vector<2x8x8xbf16>
    %85 = vector.extract_strided_slice %18 {offsets = [0, 0, 88], sizes = [2, 8, 8], strides = [1, 1, 1]} : vector<2x8x96xbf16> to vector<2x8x8xbf16>
    "tpu.trace_start"() <{level = 10 : i32, message = "bqd,bkd->bqk"}> : () -> ()
    %cst_35 = arith.constant dense<0.000000e+00> : vector<2x8x8xf32>
    %86 = tpu.matmul %83, %84, %cst_35 {dimension_numbers = #tpu.dot_dimension_numbers<[2], [2], [1], [1], [0, 0, 0, 1, 1, 1], [0], [0]>} : vector<2x8x8xbf16>, vector<2x8x8xbf16>, vector<2x8x8xf32> -> vector<2x8x8xf32>
    "tpu.trace_stop"() : () -> ()
    %cst_36 = arith.constant 0.353553385 : f32
    %87 = vector.broadcast %cst_36 : f32 to vector<2x8x8xf32>
    %88 = arith.mulf %86, %87 : vector<2x8x8xf32>
    %89 = arith.addf %88, %25 : vector<2x8x8xf32>
    %cst_37 = arith.constant dense<0xFF800000> : vector<2x8xf32>
    %90 = vector.multi_reduction <maximumf>, %89, %cst_37 [2] : vector<2x8x8xf32> to vector<2x8xf32>
    %91 = vector.shape_cast %90 : vector<2x8xf32> to vector<2x8x1xf32>
    %92 = vector.broadcast %91 : vector<2x8x1xf32> to vector<2x8x8xf32>
    %93 = arith.subf %89, %92 : vector<2x8x8xf32>
    %94 = math.exp %93 : vector<2x8x8xf32>
    %cst_38 = arith.constant dense<0.000000e+00> : vector<2x8xf32>
    %95 = vector.multi_reduction <add>, %94, %cst_38 [2] : vector<2x8x8xf32> to vector<2x8xf32>
    %96 = vector.shape_cast %95 : vector<2x8xf32> to vector<2x8x1xf32>
    %97 = tpu.reciprocal %96 {approx = true} : vector<2x8x1xf32> -> vector<2x8x1xf32>
    %98 = vector.broadcast %97 : vector<2x8x1xf32> to vector<2x8x8xf32>
    %99 = arith.mulf %94, %98 : vector<2x8x8xf32>
    %100 = arith.truncf %99 : vector<2x8x8xf32> to vector<2x8x8xbf16>
    "tpu.trace_start"() <{level = 10 : i32, message = "bqk,bkd->bqd"}> : () -> ()
    %cst_39 = arith.constant dense<0.000000e+00> : vector<2x8x8xf32>
    %101 = tpu.matmul %100, %85, %cst_39 {dimension_numbers = #tpu.dot_dimension_numbers<[2], [1], [1], [2], [0, 0, 0, 1, 1, 2], [0], [0]>} : vector<2x8x8xbf16>, vector<2x8x8xbf16>, vector<2x8x8xf32> -> vector<2x8x8xf32>
    "tpu.trace_stop"() : () -> ()
    %102 = tpu.concatenate %44, %63, %82, %101 in 2 : vector<2x8x8xf32>, vector<2x8x8xf32>, vector<2x8x8xf32>, vector<2x8x8xf32> -> vector<2x8x32xf32>
    %103 = vector.shape_cast %102 : vector<2x8x32xf32> to vector<16x32xf32>
    %104 = arith.truncf %103 : vector<16x32xf32> to vector<16x32xbf16>
    %c0_40 = arith.constant 0 : index
    %c0_41 = arith.constant 0 : index
    %105 = vector.load %arg8[%c0_40, %c0_41] : memref<32x32xbf16, #tpu.memory_space<vmem>>, vector<32x32xbf16>
    %cst_42 = arith.constant dense<0.000000e+00> : vector<16x32xf32>
    %106 = tpu.matmul %104, %105, %cst_42 {dimension_numbers = #tpu.dot_dimension_numbers<[1], [0], [0], [1], [0, 0, 1, 1], [], []>} : vector<16x32xbf16>, vector<32x32xbf16>, vector<16x32xf32> -> vector<16x32xf32>
    %c0_43 = arith.constant 0 : index
    %c0_44 = arith.constant 0 : index
    %107 = vector.load %arg9[%c0_43, %c0_44] : memref<1x32xf32, #tpu.memory_space<vmem>>, vector<1x32xf32>
    %108 = vector.shape_cast %107 : vector<1x32xf32> to vector<32xf32>
    %109 = vector.shape_cast %108 : vector<32xf32> to vector<1x32xf32>
    %110 = vector.broadcast %109 : vector<1x32xf32> to vector<16x32xf32>
    %111 = arith.addf %106, %110 : vector<16x32xf32>
    %112 = arith.addf %8, %111 : vector<16x32xf32>
    %cst_45 = arith.constant dense<0.000000e+00> : vector<16xf32>
    %113 = vector.multi_reduction <add>, %112, %cst_45 [1] : vector<16x32xf32> to vector<16xf32>
    %114 = vector.shape_cast %113 : vector<16xf32> to vector<16x1xf32>
    %cst_46 = arith.constant 3.200000e+01 : f32
    %115 = vector.broadcast %cst_46 : f32 to vector<16x1xf32>
    %116 = arith.divf %114, %115 : vector<16x1xf32>
    %117 = vector.broadcast %116 : vector<16x1xf32> to vector<16x32xf32>
    %118 = arith.subf %112, %117 : vector<16x32xf32>
    %119 = arith.mulf %118, %118 : vector<16x32xf32>
    %cst_47 = arith.constant dense<0.000000e+00> : vector<16xf32>
    %120 = vector.multi_reduction <add>, %119, %cst_47 [1] : vector<16x32xf32> to vector<16xf32>
    %121 = vector.shape_cast %120 : vector<16xf32> to vector<16x1xf32>
    %cst_48 = arith.constant 3.200000e+01 : f32
    %122 = vector.broadcast %cst_48 : f32 to vector<16x1xf32>
    %123 = arith.divf %121, %122 : vector<16x1xf32>
    %124 = vector.broadcast %116 : vector<16x1xf32> to vector<16x32xf32>
    %125 = arith.subf %112, %124 : vector<16x32xf32>
    %cst_49 = arith.constant 9.99999974E-6 : f32
    %126 = vector.broadcast %cst_49 : f32 to vector<16x1xf32>
    %127 = arith.addf %123, %126 : vector<16x1xf32>
    %128 = math.rsqrt %127 : vector<16x1xf32>
    %129 = vector.broadcast %128 : vector<16x1xf32> to vector<16x32xf32>
    %130 = arith.mulf %125, %129 : vector<16x32xf32>
    %c0_50 = arith.constant 0 : index
    %c0_51 = arith.constant 0 : index
    %131 = vector.load %arg10[%c0_50, %c0_51] : memref<1x32xf32, #tpu.memory_space<vmem>>, vector<1x32xf32>
    %132 = vector.shape_cast %131 : vector<1x32xf32> to vector<32xf32>
    %133 = vector.shape_cast %132 : vector<32xf32> to vector<1x32xf32>
    %134 = vector.broadcast %133 : vector<1x32xf32> to vector<16x32xf32>
    %135 = arith.mulf %130, %134 : vector<16x32xf32>
    %c0_52 = arith.constant 0 : index
    %c0_53 = arith.constant 0 : index
    %136 = vector.load %arg11[%c0_52, %c0_53] : memref<1x32xf32, #tpu.memory_space<vmem>>, vector<1x32xf32>
    %137 = vector.shape_cast %136 : vector<1x32xf32> to vector<32xf32>
    %138 = vector.shape_cast %137 : vector<32xf32> to vector<1x32xf32>
    %139 = vector.broadcast %138 : vector<1x32xf32> to vector<16x32xf32>
    %140 = arith.addf %135, %139 : vector<16x32xf32>
    %141 = arith.truncf %140 : vector<16x32xf32> to vector<16x32xbf16>
    %c0_54 = arith.constant 0 : index
    %c0_55 = arith.constant 0 : index
    %142 = vector.load %arg12[%c0_54, %c0_55] : memref<32x128xbf16, #tpu.memory_space<vmem>>, vector<32x128xbf16>
    %cst_56 = arith.constant dense<0.000000e+00> : vector<16x128xf32>
    %143 = tpu.matmul %141, %142, %cst_56 {dimension_numbers = #tpu.dot_dimension_numbers<[1], [0], [0], [1], [0, 0, 1, 1], [], []>} : vector<16x32xbf16>, vector<32x128xbf16>, vector<16x128xf32> -> vector<16x128xf32>
    %144 = math.tanh %143 : vector<16x128xf32>
    %145 = vector.shape_cast %144 : vector<16x128xf32> to vector<2x8x128xf32>
    %146 = arith.truncf %145 : vector<2x8x128xf32> to vector<2x8x128xbf16>
    %c0_57 = arith.constant 0 : index
    %c0_58 = arith.constant 0 : index
    %c0_59 = arith.constant 0 : index
    %147 = vector.load %arg13[%c0_57, %c0_58, %c0_59] : memref<2x8x128xbf16, #tpu.memory_space<vmem>>, vector<2x8x128xbf16>
    tpu.vector_store %arg13[%c0_57, %c0_58, %c0_59], %146 {strides = array<i32>} : memref<2x8x128xbf16, #tpu.memory_space<vmem>>, vector<2x8x128xbf16>,
    return
  }
  func.func @transform_0(%arg0: i32) -> (i32, i32, i32) {
    %c0_i32 = arith.constant 0 : i32
    %c0_i32_0 = arith.constant 0 : i32
    %c0_i32_1 = arith.constant 0 : i32
    return %arg0, %c0_i32, %c0_i32_0 : i32, i32, i32
  }
  func.func @transform_1(%arg0: i32) -> (i32, i32, i32) {
    %c0_i32 = arith.constant 0 : i32
    %c0_i32_0 = arith.constant 0 : i32
    %c0_i32_1 = arith.constant 0 : i32
    return %arg0, %c0_i32, %c0_i32_0 : i32, i32, i32
  }
  func.func @transform_2(%arg0: i32) -> (i32, i32, i32) {
    %c0_i32 = arith.constant 0 : i32
    %c0_i32_0 = arith.constant 0 : i32
    %c0_i32_1 = arith.constant 0 : i32
    return %arg0, %c0_i32, %c0_i32_0 : i32, i32, i32
  }
  func.func @transform_3(%arg0: i32) -> (i32, i32) {
    %c0_i32 = arith.constant 0 : i32
    %c0_i32_0 = arith.constant 0 : i32
    %c0_i32_1 = arith.constant 0 : i32
    return %c0_i32, %c0_i32_0 : i32, i32
  }
  func.func @transform_4(%arg0: i32) -> (i32, i32) {
    %c0_i32 = arith.constant 0 : i32
    %c0_i32_0 = arith.constant 0 : i32
    %c0_i32_1 = arith.constant 0 : i32
    return %c0_i32, %c0_i32_0 : i32, i32
  }
  func.func @transform_5(%arg0: i32) -> (i32, i32) {
    %c0_i32 = arith.constant 0 : i32
    %c0_i32_0 = arith.constant 0 : i32
    %c0_i32_1 = arith.constant 0 : i32
    return %c0_i32, %c0_i32_0 : i32, i32
  }
  func.func @transform_6(%arg0: i32) -> (i32, i32) {
    %c0_i32 = arith.constant 0 : i32
    %c0_i32_0 = arith.constant 0 : i32
    %c0_i32_1 = arith.constant 0 : i32
    return %c0_i32, %c0_i32_0 : i32, i32
  }
  func.func @transform_7(%arg0: i32) -> (i32, i32) {
    %c0_i32 = arith.constant 0 : i32
    %c0_i32_0 = arith.constant 0 : i32
    %c0_i32_1 = arith.constant 0 : i32
    return %c0_i32, %c0_i32_0 : i32, i32
  }
  func.func @transform_8(%arg0: i32) -> (i32, i32) {
    %c0_i32 = arith.constant 0 : i32
    %c0_i32_0 = arith.constant 0 : i32
    %c0_i32_1 = arith.constant 0 : i32
    return %c0_i32, %c0_i32_0 : i32, i32
  }
  func.func @transform_9(%arg0: i32) -> (i32, i32) {
    %c0_i32 = arith.constant 0 : i32
    %c0_i32_0 = arith.constant 0 : i32
    %c0_i32_1 = arith.constant 0 : i32
    return %c0_i32, %c0_i32_0 : i32, i32
  }
  func.func @transform_10(%arg0: i32) -> (i32, i32) {
    %c0_i32 = arith.constant 0 : i32
    %c0_i32_0 = arith.constant 0 : i32
    %c0_i32_1 = arith.constant 0 : i32
    return %c0_i32, %c0_i32_0 : i32, i32
  }
  func.func @transform_11(%arg0: i32) -> (i32, i32) {
    %c0_i32 = arith.constant 0 : i32
    %c0_i32_0 = arith.constant 0 : i32
    %c0_i32_1 = arith.constant 0 : i32
    return %c0_i32, %c0_i32_0 : i32, i32
  }
  func.func @transform_12(%arg0: i32) -> (i32, i32, i32) {
    %c0_i32 = arith.constant 0 : i32
    %c0_i32_0 = arith.constant 0 : i32
    %c0_i32_1 = arith.constant 0 : i32
    return %arg0, %c0_i32, %c0_i32_0 : i32, i32, i32
  }
}

</mosaic_0001>

<llo_original>
// kernel: tpu_custom_call.1
$region0: #{tpu_custom_call.1}
  #allocation0 [shape = 'u32[]', space=smem, size = 0x4, offset = 0x4, fixed_abs, tag = 'smem constant byte address 0x4 - core index']
  #allocation1 [shape = 'u32[144,128]{1,0:T(1,128)}', space=vmem, size = 0x12000, scoped, tag = 'internal scratch']
  %s0 = inlined_call_operand.hbm [shape: bf16[2,8,32], index: 0, kind: input, shape index: {}]
  %s1 = inlined_call_operand.hbm [shape: bf16[2,8,32], index: 1, kind: input, shape index: {}]
  %s2 = inlined_call_operand.vmem [shape: f32[2,1,8], index: 2, kind: input, shape index: {}]
  %s3 = inlined_call_operand.hbm [shape: bf16[32,32], index: 3, kind: input, shape index: {}]
  %s4 = inlined_call_operand.hbm [shape: bf16[32,32], index: 4, kind: input, shape index: {}]
  %s5 = inlined_call_operand.vmem [shape: bf16[32,96], index: 5, kind: input, shape index: {}]
  %s6 = inlined_call_operand.hbm [shape: f32[1,96], index: 6, kind: input, shape index: {}]
  %s7 = inlined_call_operand.hbm [shape: bf16[32,32], index: 7, kind: input, shape index: {}]
  %s8 = inlined_call_operand.hbm [shape: f32[1,32], index: 8, kind: input, shape index: {}]
  %s9 = inlined_call_operand.hbm [shape: f32[1,32], index: 9, kind: input, shape index: {}]
  %s10 = inlined_call_operand.vmem [shape: f32[1,32], index: 10, kind: input, shape index: {}]
  %s11 = inlined_call_operand.vmem [shape: bf16[32,128], index: 11, kind: input, shape index: {}]
  %s12 = inlined_call_operand.hbm [shape: bf16[2,8,128], index: 12, kind: output, shape index: {}]
  %s13 = sld [smem:[#allocation0]]
  $region90: #{tpu_custom_call.1} parent=0
    _
  %s15 = ssub.s32 1, %s13
  %s16 = scalar_select 0, %s15, %s13
  $region1: #{tpu_custom_call.1} parent=0
    #allocation2 [shape = 'u8[4096]{0}', space=vmem, size = 0x1000, scoped, tag = 'input window, operand 0, single buffered']
    #allocation3 [shape = 's32[1]{0}', space=sflag, size = 0x4, scoped, tag = 'scoped memory for tpu_custom_call.1']
    #allocation4 [shape = 's32[1]{0}', space=sflag, size = 0x4, scoped, tag = 'scoped memory for tpu_custom_call.1']
    #allocation5 [shape = 'u8[4096]{0}', space=vmem, size = 0x1000, scoped, tag = 'input window, operand 1, single buffered']
    #allocation6 [shape = 's32[1]{0}', space=sflag, size = 0x4, scoped, tag = 'scoped memory for tpu_custom_call.1']
    #allocation7 [shape = 'u8[8192]{0}', space=vmem, size = 0x2000, scoped, tag = 'input window, operand 3, single buffered']
    #allocation8 [shape = 'u8[8192]{0}', space=vmem, size = 0x2000, scoped, tag = 'input window, operand 4, single buffered']
    #allocation9 [shape = 's32[1]{0}', space=sflag, size = 0x4, scoped, tag = 'scoped memory for tpu_custom_call.1']
    #allocation10 [shape = 'u8[512]{0}', space=vmem, size = 0x400, scoped, tag = 'input window, operand 6, single buffered']
    #allocation11 [shape = 'u8[8192]{0}', space=vmem, size = 0x2000, scoped, tag = 'input window, operand 7, single buffered']
    #allocation12 [shape = 's32[1]{0}', space=sflag, size = 0x4, scoped, tag = 'scoped memory for tpu_custom_call.1']
    #allocation13 [shape = 'u8[512]{0}', space=vmem, size = 0x400, scoped, tag = 'input window, operand 8, single buffered']
    #allocation14 [shape = 'u8[512]{0}', space=vmem, size = 0x400, scoped, tag = 'input window, operand 9, single buffered']
    #allocation15 [shape = 's32[1]{0}', space=sflag, size = 0x4, scoped, tag = 'scoped memory for tpu_custom_call.1']
    #allocation16 [shape = 'u8[4096]{0}', space=vmem, size = 0x1000, scoped, tag = 'output window, operand 0, single buffered']
    %17 = vsyncpa [#allocation3], 0
    %18 = vsyncpa [#allocation6], 0
    %19 = vsyncpa [#allocation9], 0
    %20 = vsyncpa [#allocation12], 0
    %21 = vsyncpa [#allocation15], 0
    %22 = vsyncpa [#allocation4], 0
    // Predicated region
    $region2: #{tpu_custom_call.1} parent=1 // pred_check
      _
    $region3: #{tpu_custom_call.1} parent=1 // pred_check_branch
      %24 = sbr.rel (0) target = $region5
    $region4: #{tpu_custom_call.1} parent=1 // pred_region
      %s26 = ssub.s32 128, 128
      %27 = vsyncadd [#allocation3], %s26
      %s28 = sshll.u32 [#allocation2], 4
      %s29 = int_to_ptr.vmem [resolvable:$true] %s28
      %34 = dma.hbm_to_vmem [thread:$0]  %s0, 128, %s29, [#allocation3], 64, 64, 4
    $region5: #{tpu_custom_call.1} parent=1 // pred_fallthru
      _
    // Predicated region
    $region6: #{tpu_custom_call.1} parent=1 // pred_check
      _
    $region7: #{tpu_custom_call.1} parent=1 // pred_check_branch
      %36 = sbr.rel (0) target = $region9
    $region8: #{tpu_custom_call.1} parent=1 // pred_region
      %s38 = ssub.s32 128, 128
      %39 = vsyncadd [#allocation6], %s38
      %s40 = sshll.u32 [#allocation5], 4
      %s41 = int_to_ptr.vmem [resolvable:$true] %s40
      %46 = dma.hbm_to_vmem [thread:$0]  %s1, 128, %s41, [#allocation6], 64, 64, 4
    $region9: #{tpu_custom_call.1} parent=1 // pred_fallthru
      _
    // Predicated region
    $region10: #{tpu_custom_call.1} parent=1 // pred_check
      _
    $region11: #{tpu_custom_call.1} parent=1 // pred_check_branch
      %48 = sbr.rel (0) target = $region13
    $region12: #{tpu_custom_call.1} parent=1 // pred_region
      _
    $region13: #{tpu_custom_call.1} parent=1 // pred_fallthru
      _
    // Predicated region
    $region14: #{tpu_custom_call.1} parent=1 // pred_check
      _
    $region15: #{tpu_custom_call.1} parent=1 // pred_check_branch
      %50 = sbr.rel (0) target = $region17
    $region16: #{tpu_custom_call.1} parent=1 // pred_region
      %s52 = ssub.s32 256, 256
      %53 = vsyncadd [#allocation6], %s52
      %s54 = sshll.u32 [#allocation7], 4
      %s55 = int_to_ptr.vmem [resolvable:$true] %s54
      %60 = dma.hbm_to_vmem [thread:$0]  %s3, 256, %s55, [#allocation6], 64, 64, 4
    $region17: #{tpu_custom_call.1} parent=1 // pred_fallthru
      _
    // Predicated region
    $region18: #{tpu_custom_call.1} parent=1 // pred_check
      _
    $region19: #{tpu_custom_call.1} parent=1 // pred_check_branch
      %62 = sbr.rel (0) target = $region21
    $region20: #{tpu_custom_call.1} parent=1 // pred_region
      %s64 = ssub.s32 256, 256
      %65 = vsyncadd [#allocation9], %s64
      %s66 = sshll.u32 [#allocation8], 4
      %s67 = int_to_ptr.vmem [resolvable:$true] %s66
      %72 = dma.hbm_to_vmem [thread:$0]  %s4, 256, %s67, [#allocation9], 64, 64, 4
    $region21: #{tpu_custom_call.1} parent=1 // pred_fallthru
      _
    // Predicated region
    $region22: #{tpu_custom_call.1} parent=1 // pred_check
      _
    $region23: #{tpu_custom_call.1} parent=1 // pred_check_branch
      %74 = sbr.rel (0) target = $region25
    $region24: #{tpu_custom_call.1} parent=1 // pred_region
      _
    $region25: #{tpu_custom_call.1} parent=1 // pred_fallthru
      _
    // Predicated region
    $region26: #{tpu_custom_call.1} parent=1 // pred_check
      _
    $region27: #{tpu_custom_call.1} parent=1 // pred_check_branch
      %76 = sbr.rel (0) target = $region29
    $region28: #{tpu_custom_call.1} parent=1 // pred_region
      %s78 = ssub.s32 16, 16
      %79 = vsyncadd [#allocation9], %s78
      %s81 = sshll.u32 [#allocation10], 4
      %s82 = int_to_ptr.vmem [resolvable:$true] %s81
      %84 = dma.hbm_to_vmem [thread:$0]  %s6, 16, %s82, [#allocation9]
    $region29: #{tpu_custom_call.1} parent=1 // pred_fallthru
      _
    // Predicated region
    $region30: #{tpu_custom_call.1} parent=1 // pred_check
      _
    $region31: #{tpu_custom_call.1} parent=1 // pred_check_branch
      %86 = sbr.rel (0) target = $region33
    $region32: #{tpu_custom_call.1} parent=1 // pred_region
      %s88 = ssub.s32 256, 256
      %89 = vsyncadd [#allocation12], %s88
      %s90 = sshll.u32 [#allocation11], 4
      %s91 = int_to_ptr.vmem [resolvable:$true] %s90
      %96 = dma.hbm_to_vmem [thread:$0]  %s7, 256, %s91, [#allocation12], 64, 64, 4
    $region33: #{tpu_custom_call.1} parent=1 // pred_fallthru
      _
    // Predicated region
    $region34: #{tpu_custom_call.1} parent=1 // pred_check
      _
    $region35: #{tpu_custom_call.1} parent=1 // pred_check_branch
      %98 = sbr.rel (0) target = $region37
    $region36: #{tpu_custom_call.1} parent=1 // pred_region
      %s100 = ssub.s32 16, 16
      %101 = vsyncadd [#allocation12], %s100
      %s103 = sshll.u32 [#allocation13], 4
      %s104 = int_to_ptr.vmem [resolvable:$true] %s103
      %106 = dma.hbm_to_vmem [thread:$0]  %s8, 16, %s104, [#allocation12]
    $region37: #{tpu_custom_call.1} parent=1 // pred_fallthru
      _
    // Predicated region
    $region38: #{tpu_custom_call.1} parent=1 // pred_check
      _
    $region39: #{tpu_custom_call.1} parent=1 // pred_check_branch
      %108 = sbr.rel (0) target = $region41
    $region40: #{tpu_custom_call.1} parent=1 // pred_region
      %s110 = ssub.s32 16, 16
      %111 = vsyncadd [#allocation15], %s110
      %s113 = sshll.u32 [#allocation14], 4
      %s114 = int_to_ptr.vmem [resolvable:$true] %s113
      %116 = dma.hbm_to_vmem [thread:$0]  %s9, 16, %s114, [#allocation15]
    $region41: #{tpu_custom_call.1} parent=1 // pred_fallthru
      _
    // Predicated region
    $region42: #{tpu_custom_call.1} parent=1 // pred_check
      _
    $region43: #{tpu_custom_call.1} parent=1 // pred_check_branch
      %118 = sbr.rel (0) target = $region45
    $region44: #{tpu_custom_call.1} parent=1 // pred_region
      _
    $region45: #{tpu_custom_call.1} parent=1 // pred_fallthru
      _
    // Predicated region
    $region46: #{tpu_custom_call.1} parent=1 // pred_check
      _
    $region47: #{tpu_custom_call.1} parent=1 // pred_check_branch
      %120 = sbr.rel (0) target = $region49
    $region48: #{tpu_custom_call.1} parent=1 // pred_region
      _
    $region49: #{tpu_custom_call.1} parent=1 // pred_fallthru
      _
    // Predicated region
    $region50: #{tpu_custom_call.1} parent=1 // pred_check
      _
    $region51: #{tpu_custom_call.1} parent=1 // pred_check_branch
      %122 = sbr.rel (0) target = $region53
    $region52: #{tpu_custom_call.1} parent=1 // pred_region
      %123 = dma.done [#allocation3], 128
    $region53: #{tpu_custom_call.1} parent=1 // pred_fallthru
      _
    // Predicated region
    $region54: #{tpu_custom_call.1} parent=1 // pred_check
      _
    $region55: #{tpu_custom_call.1} parent=1 // pred_check_branch
      %125 = sbr.rel (0) target = $region57
    $region56: #{tpu_custom_call.1} parent=1 // pred_region
      %126 = dma.done [#allocation6], 128
    $region57: #{tpu_custom_call.1} parent=1 // pred_fallthru
      _
    // Predicated region
    $region58: #{tpu_custom_call.1} parent=1 // pred_check
      _
    $region59: #{tpu_custom_call.1} parent=1 // pred_check_branch
      %128 = sbr.rel (0) target = $region61
    $region60: #{tpu_custom_call.1} parent=1 // pred_region
      %129 = dma.done [#allocation6], 256
    $region61: #{tpu_custom_call.1} parent=1 // pred_fallthru
      _
    // Predicated region
    $region62: #{tpu_custom_call.1} parent=1 // pred_check
      _
    $region63: #{tpu_custom_call.1} parent=1 // pred_check_branch
      %131 = sbr.rel (0) target = $region65
    $region64: #{tpu_custom_call.1} parent=1 // pred_region
      %132 = dma.done [#allocation9], 256
    $region65: #{tpu_custom_call.1} parent=1 // pred_fallthru
      _
    // Predicated region
    $region66: #{tpu_custom_call.1} parent=1 // pred_check
      _
    $region67: #{tpu_custom_call.1} parent=1 // pred_check_branch
      %134 = sbr.rel (0) target = $region69
    $region68: #{tpu_custom_call.1} parent=1 // pred_region
      %135 = dma.done [#allocation9], 16
    $region69: #{tpu_custom_call.1} parent=1 // pred_fallthru
      _
    // Predicated region
    $region70: #{tpu_custom_call.1} parent=1 // pred_check
      _
    $region71: #{tpu_custom_call.1} parent=1 // pred_check_branch
      %137 = sbr.rel (0) target = $region73
    $region72: #{tpu_custom_call.1} parent=1 // pred_region
      %138 = dma.done [#allocation12], 256
    $region73: #{tpu_custom_call.1} parent=1 // pred_fallthru
      _
    // Predicated region
    $region74: #{tpu_custom_call.1} parent=1 // pred_check
      _
    $region75: #{tpu_custom_call.1} parent=1 // pred_check_branch
      %140 = sbr.rel (0) target = $region77
    $region76: #{tpu_custom_call.1} parent=1 // pred_region
      %141 = dma.done [#allocation12], 16
    $region77: #{tpu_custom_call.1} parent=1 // pred_fallthru
      _
    // Predicated region
    $region78: #{tpu_custom_call.1} parent=1 // pred_check
      _
    $region79: #{tpu_custom_call.1} parent=1 // pred_check_branch
      %143 = sbr.rel (0) target = $region81
    $region80: #{tpu_custom_call.1} parent=1 // pred_region
      %144 = dma.done [#allocation15], 16
    $region81: #{tpu_custom_call.1} parent=1 // pred_fallthru
      _
    %v146 = vld [vmem:[#allocation2] sm:$0xf]
    %v147 = vld [vmem:[#allocation2 + $0x4] sm:$0xf]
    %v148 = vld [vmem:[#allocation7] sm:$0xf]
    %v149 = vld [vmem:[#allocation7 + $0x4] sm:$0xf]
    %v150 = vld [vmem:[#allocation7 + $0x8] sm:$0xf]
    %v151 = vld [vmem:[#allocation7 + $0xc] sm:$0xf]
    %v152 = vld [vmem:[#allocation5] sm:$0xf]
    %v153 = vld [vmem:[#allocation5 + $0x4] sm:$0xf]
    %v154 = vld [vmem:[#allocation8] sm:$0xf]
    %v155 = vld [vmem:[#allocation8 + $0x4] sm:$0xf]
    %v156 = vld [vmem:[#allocation8 + $0x8] sm:$0xf]
    %v157 = vld [vmem:[#allocation8 + $0xc] sm:$0xf]
    %v160 = vunpack.c.l.b16 %v152
    %v161 = vunpack.c.l.b16 %v153
    %v162 = vpack.c.b16 %v161, %v160
    %v167 = vunpack.c.l.b16 %v154
    %v168 = vunpack.c.l.b16 %v155
    %v169 = vunpack.c.l.b16 %v156
    %v170 = vunpack.c.l.b16 %v157
    %v171 = vpack.c.b16 %v168, %v167
    %v172 = vpack.c.b16 %v170, %v169
    %vm175 = vcmask 261120
    %v177 = vsel %vm175, %v162, 0
    %179 = vmatprep.subr.bf16.mxu0 0
    %180 = vmatpush1.bf16.msra.mxu0 %v171
    %181 = vmatprep.subr.bf16.mxu0 0
    %182 = vmatpush1.bf16.msra.mxu0 %v172
    %183 = vmatprep.subr.bf16.mxu0 0
    %184 = vmatpush1.bf16.msra.mxu0 0
    %185 = vmatprep.subr.bf16.mxu0 0
    %186 = vmatpush1.bf16.msra.mxu0 0
    %187 = vmatprep.subr.bf16.mxu0 0
    %188 = vmatpush1.bf16.msra.mxu0 0
    %189 = vmatprep.subr.bf16.mxu0 0
    %190 = vmatpush1.bf16.msra.mxu0 0
    %191 = vmatprep.subr.bf16.mxu0 0
    %192 = vmatpush1.bf16.msra.mxu0 0
    %193 = vmatprep.subr.bf16.mxu0 0
    %194 = vmatpush1.bf16.msra.mxu0 0
    %195 = vmatprep.subr.bf16.mxu0 0
    %196 = vmatpush1.bf16.msra.mxu0 0
    %197 = vmatprep.subr.bf16.mxu0 0
    %198 = vmatpush1.bf16.msra.mxu0 0
    %199 = vmatprep.subr.bf16.mxu0 0
    %200 = vmatpush1.bf16.msra.mxu0 0
    %201 = vmatprep.subr.bf16.mxu0 0
    %202 = vmatpush1.bf16.msra.mxu0 0
    %203 = vmatprep.subr.bf16.mxu0 0
    %204 = vmatpush1.bf16.msra.mxu0 0
    %205 = vmatprep.subr.bf16.mxu0 0
    %206 = vmatpush1.bf16.msra.mxu0 0
    %207 = vmatprep.subr.bf16.mxu0 0
    %208 = vmatpush1.bf16.msra.mxu0 0
    %209 = vmatprep.subr.bf16.mxu0 0
    %210 = vmatpush1.bf16.msra.mxu0 0
    %211 = vmatprep.mubr.bf16.mxu0 0
    %212 = vmatmul.mubr.bf16.gmra.mrb[0].mxu0 %v177
    %v213 = vpop.f32.mrb[0].mxu0
    %v214 = vadd.f32 0.0, %v213
    %v215 = vpop.f32.mrb[0].mxu0
    %v216 = vpop.f32.mrb[0].mxu0
    %v217 = vadd.f32 0.0, %v216
    %v218 = vpop.f32.mrb[0].mxu0
    %219 = vdwg.mxu0
    %v222 = vunpack.c.l.b16 %v146
    %v223 = vunpack.c.l.b16 %v147
    %v224 = vpack.c.b16 %v223, %v222
    %v229 = vunpack.c.l.b16 %v148
    %v230 = vunpack.c.l.b16 %v149
    %v231 = vunpack.c.l.b16 %v150
    %v232 = vunpack.c.l.b16 %v151
    %v233 = vpack.c.b16 %v230, %v229
    %v234 = vpack.c.b16 %v232, %v231
    %v238 = vsel %vm175, %v224, 0
    %240 = vmatprep.subr.bf16.mxu0 0
    %241 = vmatpush1.bf16.msra.mxu0 %v233
    %242 = vmatprep.subr.bf16.mxu0 0
    %243 = vmatpush1.bf16.msra.mxu0 %v234
    %244 = vmatprep.subr.bf16.mxu0 0
    %245 = vmatpush1.bf16.msra.mxu0 0
    %246 = vmatprep.subr.bf16.mxu0 0
    %247 = vmatpush1.bf16.msra.mxu0 0
    %248 = vmatprep.subr.bf16.mxu0 0
    %249 = vmatpush1.bf16.msra.mxu0 0
    %250 = vmatprep.subr.bf16.mxu0 0
    %251 = vmatpush1.bf16.msra.mxu0 0
    %252 = vmatprep.subr.bf16.mxu0 0
    %253 = vmatpush1.bf16.msra.mxu0 0
    %254 = vmatprep.subr.bf16.mxu0 0
    %255 = vmatpush1.bf16.msra.mxu0 0
    %256 = vmatprep.subr.bf16.mxu0 0
    %257 = vmatpush1.bf16.msra.mxu0 0
    %258 = vmatprep.subr.bf16.mxu0 0
    %259 = vmatpush1.bf16.msra.mxu0 0
    %260 = vmatprep.subr.bf16.mxu0 0
    %261 = vmatpush1.bf16.msra.mxu0 0
    %262 = vmatprep.subr.bf16.mxu0 0
    %263 = vmatpush1.bf16.msra.mxu0 0
    %264 = vmatprep.subr.bf16.mxu0 0
    %265 = vmatpush1.bf16.msra.mxu0 0
    %266 = vmatprep.subr.bf16.mxu0 0
    %267 = vmatpush1.bf16.msra.mxu0 0
    %268 = vmatprep.subr.bf16.mxu0 0
    %269 = vmatpush1.bf16.msra.mxu0 0
    %270 = vmatprep.subr.bf16.mxu0 0
    %271 = vmatpush1.bf16.msra.mxu0 0
    %272 = vmatprep.mubr.bf16.mxu0 0
    %273 = vmatmul.mubr.bf16.gmra.mrb[0].mxu0 %v238
    %v274 = vpop.f32.mrb[0].mxu0
    %v275 = vadd.f32 %v214, %v274
    %v276 = vpop.f32.mrb[0].mxu0
    %v277 = vpop.f32.mrb[0].mxu0
    %v278 = vadd.f32 %v217, %v277
    %v279 = vpop.f32.mrb[0].mxu0
    %280 = vdwg.mxu0
    %v281 = vpack.c.bf16 %v278, %v275
    %v282 = vld [vmem:[%s5] sm:$0xf]
    %v283 = vld [vmem:[%s5 + $0x4] sm:$0xf]
    %v284 = vld [vmem:[%s5 + $0x8] sm:$0xf]
    %v285 = vld [vmem:[%s5 + $0xc] sm:$0xf]
    %v286 = vld [vmem:[#allocation10] sm:$0x1]
    %v288 = vlaneseq
    %v289 = vshrl.u32 %v288, 7
    %v290 = vsub.s32 0, %v289
    %v291 = vrot.slane %v286, %v290
    %v297 = vunpack.c.l.b16 %v282
    %v298 = vunpack.c.l.b16 %v283
    %v299 = vunpack.c.l.b16 %v284
    %v300 = vunpack.c.l.b16 %v285
    %v301 = vpack.c.b16 %v298, %v297
    %v302 = vpack.c.b16 %v300, %v299
    %v306 = vsel %vm175, %v281, 0
    %308 = vmatprep.subr.bf16.mxu0 0
    %309 = vmatpush1.bf16.msra.mxu0 %v301
    %310 = vmatprep.subr.bf16.mxu0 0
    %311 = vmatpush1.bf16.msra.mxu0 %v302
    %312 = vmatprep.subr.bf16.mxu0 0
    %313 = vmatpush1.bf16.msra.mxu0 0
    %314 = vmatprep.subr.bf16.mxu0 0
    %315 = vmatpush1.bf16.msra.mxu0 0
    %316 = vmatprep.subr.bf16.mxu0 0
    %317 = vmatpush1.bf16.msra.mxu0 0
    %318 = vmatprep.subr.bf16.mxu0 0
    %319 = vmatpush1.bf16.msra.mxu0 0
    %320 = vmatprep.subr.bf16.mxu0 0
    %321 = vmatpush1.bf16.msra.mxu0 0
    %322 = vmatprep.subr.bf16.mxu0 0
    %323 = vmatpush1.bf16.msra.mxu0 0
    %324 = vmatprep.subr.bf16.mxu0 0
    %325 = vmatpush1.bf16.msra.mxu0 0
    %326 = vmatprep.subr.bf16.mxu0 0
    %327 = vmatpush1.bf16.msra.mxu0 0
    %328 = vmatprep.subr.bf16.mxu0 0
    %329 = vmatpush1.bf16.msra.mxu0 0
    %330 = vmatprep.subr.bf16.mxu0 0
    %331 = vmatpush1.bf16.msra.mxu0 0
    %332 = vmatprep.subr.bf16.mxu0 0
    %333 = vmatpush1.bf16.msra.mxu0 0
    %334 = vmatprep.subr.bf16.mxu0 0
    %335 = vmatpush1.bf16.msra.mxu0 0
    %336 = vmatprep.subr.bf16.mxu0 0
    %337 = vmatpush1.bf16.msra.mxu0 0
    %338 = vmatprep.subr.bf16.mxu0 0
    %339 = vmatpush1.bf16.msra.mxu0 0
    %340 = vmatprep.mubr.bf16.mxu0 0
    %341 = vmatmul.mubr.bf16.gmra.mrb[0].mxu0 %v306
    %v342 = vpop.f32.mrb[0].mxu0
    %v343 = vadd.f32 %v291, %v342
    %v344 = vpop.f32.mrb[0].mxu0
    %v345 = vpop.f32.mrb[0].mxu0
    %v346 = vadd.f32 %v291, %v345
    %v347 = vpop.f32.mrb[0].mxu0
    %348 = vdwg.mxu0
    %v349 = vpack.c.bf16 %v343, %v343
    %v350 = vpack.c.bf16 %v346, %v346
    %v351 = vld [vmem:[%s2] sm:$0x1]
    %v352 = vld [vmem:[%s2 + $0x1] sm:$0x1]
    %v353 = vsub.f32 1.0, %v351
    %v354 = vsub.f32 1.0, %v352
    %v355 = vmul.f32 %v353, -1e+09
    %v356 = vmul.f32 %v354, -1e+09
    %v359 = vlaneseq
    %v360 = vshrl.u32 %v359, 7
    %v361 = vsub.s32 0, %v360
    %v362 = vrot.slane %v355, %v361
    %v363 = vlaneseq
    %v364 = vshrl.u32 %v363, 7
    %v365 = vsub.s32 0, %v364
    %v366 = vrot.slane %v356, %v365
    %370 = vrot.lane.b32.xlu0 %v349, 96
    %v371 = vpop.permute.xlu0 %370
    %vm372 = vcmask 64512
    %v374 = vsel %vm372, %v349, 0
    %v377 = vsel %vm372, %v371, 0
    %379 = vmatprep.subr.bf16.mxu0 0
    %380 = vmatpush1.bf16.xpose.msra.mxu0 %v377
    %381 = vmatprep.subr.bf16.mxu0 0
    %382 = vmatpush1.bf16.xpose.msra.mxu0 0
    %383 = vmatprep.subr.bf16.mxu0 0
    %384 = vmatpush1.bf16.xpose.msra.mxu0 0
    %385 = vmatprep.subr.bf16.mxu0 0
    %386 = vmatpush1.bf16.xpose.msra.mxu0 0
    %387 = vmatprep.subr.bf16.mxu0 0
    %388 = vmatpush1.bf16.xpose.msra.mxu0 0
    %389 = vmatprep.subr.bf16.mxu0 0
    %390 = vmatpush1.bf16.xpose.msra.mxu0 0
    %391 = vmatprep.subr.bf16.mxu0 0
    %392 = vmatpush1.bf16.xpose.msra.mxu0 0
    %393 = vmatprep.subr.bf16.mxu0 0
    %394 = vmatpush1.bf16.xpose.msra.mxu0 0
    %395 = vmatprep.subr.bf16.mxu0 0
    %396 = vmatpush1.bf16.xpose.msra.mxu0 0
    %397 = vmatprep.subr.bf16.mxu0 0
    %398 = vmatpush1.bf16.xpose.msra.mxu0 0
    %399 = vmatprep.subr.bf16.mxu0 0
    %400 = vmatpush1.bf16.xpose.msra.mxu0 0
    %401 = vmatprep.subr.bf16.mxu0 0
    %402 = vmatpush1.bf16.xpose.msra.mxu0 0
    %403 = vmatprep.subr.bf16.mxu0 0
    %404 = vmatpush1.bf16.xpose.msra.mxu0 0
    %405 = vmatprep.subr.bf16.mxu0 0
    %406 = vmatpush1.bf16.xpose.msra.mxu0 0
    %407 = vmatprep.subr.bf16.mxu0 0
    %408 = vmatpush1.bf16.xpose.msra.mxu0 0
    %409 = vmatprep.subr.bf16.mxu0 0
    %410 = vmatpush1.bf16.xpose.msra.mxu0 0
    %411 = vmatprep.mubr.bf16.mxu0 0
    %412 = vmatmul.mubr.bf16.gmra.mrb[0].mxu0 %v374
    %v413 = vpop.f32.mrb[0].mxu0
    %v414 = vadd.f32 0.0, %v413
    %v415 = vpop.f32.mrb[0].mxu0
    %v416 = vpop.f32.mrb[0].mxu0
    %v417 = vpop.f32.mrb[0].mxu0
    %418 = vdwg.mxu0
    %420 = vrot.lane.b32.xlu0 %v350, 96
    %v421 = vpop.permute.xlu0 %420
    %v423 = vsel %vm372, %v350, 0
    %v426 = vsel %vm372, %v421, 0
    %428 = vmatprep.subr.bf16.mxu0 0
    %429 = vmatpush1.bf16.xpose.msra.mxu0 %v426
    %430 = vmatprep.subr.bf16.mxu0 0
    %431 = vmatpush1.bf16.xpose.msra.mxu0 0
    %432 = vmatprep.subr.bf16.mxu0 0
    %433 = vmatpush1.bf16.xpose.msra.mxu0 0
    %434 = vmatprep.subr.bf16.mxu0 0
    %435 = vmatpush1.bf16.xpose.msra.mxu0 0
    %436 = vmatprep.subr.bf16.mxu0 0
    %437 = vmatpush1.bf16.xpose.msra.mxu0 0
    %438 = vmatprep.subr.bf16.mxu0 0
    %439 = vmatpush1.bf16.xpose.msra.mxu0 0
    %440 = vmatprep.subr.bf16.mxu0 0
    %441 = vmatpush1.bf16.xpose.msra.mxu0 0
    %442 = vmatprep.subr.bf16.mxu0 0
    %443 = vmatpush1.bf16.xpose.msra.mxu0 0
    %444 = vmatprep.subr.bf16.mxu0 0
    %445 = vmatpush1.bf16.xpose.msra.mxu0 0
    %446 = vmatprep.subr.bf16.mxu0 0
    %447 = vmatpush1.bf16.xpose.msra.mxu0 0
    %448 = vmatprep.subr.bf16.mxu0 0
    %449 = vmatpush1.bf16.xpose.msra.mxu0 0
    %450 = vmatprep.subr.bf16.mxu0 0
    %451 = vmatpush1.bf16.xpose.msra.mxu0 0
    %452 = vmatprep.subr.bf16.mxu0 0
    %453 = vmatpush1.bf16.xpose.msra.mxu0 0
    %454 = vmatprep.subr.bf16.mxu0 0
    %455 = vmatpush1.bf16.xpose.msra.mxu0 0
    %456 = vmatprep.subr.bf16.mxu0 0
    %457 = vmatpush1.bf16.xpose.msra.mxu0 0
    %458 = vmatprep.subr.bf16.mxu0 0
    %459 = vmatpush1.bf16.xpose.msra.mxu0 0
    %460 = vmatprep.mubr.bf16.mxu0 0
    %461 = vmatmul.mubr.bf16.gmra.mrb[0].mxu0 %v423
    %v462 = vpop.f32.mrb[0].mxu0
    %v463 = vadd.f32 0.0, %v462
    %v464 = vpop.f32.mrb[0].mxu0
    %v465 = vpop.f32.mrb[0].mxu0
    %v466 = vpop.f32.mrb[0].mxu0
    %467 = vdwg.mxu0
    %v468 = vmul.f32 %v414, 0.35355338
    %v469 = vmul.f32 %v463, 0.35355338
    %v470 = vadd.f32 %v468, %v362
    %v471 = vadd.f32 %v469, %v366
    %v472 = vsel %vm372, %v470, -inf
    %473 = vmax.xlane.f32.xlu0 %v472
    %v474 = vpop.xlane.xlu0 %473
    %v475 = vsel %vm372, %v471, -inf
    %476 = vmax.xlane.f32.xlu0 %v475
    %v477 = vpop.xlane.xlu0 %476
    %v478 = vsub.f32 %v470, %v474
    %v479 = vsub.f32 %v471, %v477
    %v480 = vmul.f32 %v478, 1.442695
    %v481 = vpow.pop %v480
    %v482 = vmul.f32 %v479, 1.442695
    %v483 = vpow.pop %v482
    %v484 = vsel %vm372, %v481, 0.0
    %485 = vadd.xlane.f32.xlu0 %v484
    %v486 = vpop.xlane.xlu0 %485
    %v487 = vsel %vm372, %v483, 0.0
    %488 = vadd.xlane.f32.xlu0 %v487
    %v489 = vpop.xlane.xlu0 %488
    %v490 = vrcp.pop %v486
    %v491 = vrcp.pop %v489
    %v492 = vmul.f32 %v481, %v490
    %v493 = vmul.f32 %v483, %v491
    %v494 = vpack.c.bf16 %v492, %v492
    %v495 = vpack.c.bf16 %v493, %v493
    %496 = vrot.lane.b32.xlu0 %v349, 64
    %v497 = vpop.permute.xlu0 %496
    %v499 = vsel %vm372, %v494, 0
    %vm501 = vcmask 1043456
    %v503 = vsel %vm501, %v497, 0
    %505 = vmatprep.subr.bf16.mxu0 0
    %506 = vmatpush1.bf16.msra.mxu0 %v503
    %507 = vmatprep.subr.bf16.mxu0 0
    %508 = vmatpush1.bf16.msra.mxu0 0
    %509 = vmatprep.subr.bf16.mxu0 0
    %510 = vmatpush1.bf16.msra.mxu0 0
    %511 = vmatprep.subr.bf16.mxu0 0
    %512 = vmatpush1.bf16.msra.mxu0 0
    %513 = vmatprep.subr.bf16.mxu0 0
    %514 = vmatpush1.bf16.msra.mxu0 0
    %515 = vmatprep.subr.bf16.mxu0 0
    %516 = vmatpush1.bf16.msra.mxu0 0
    %517 = vmatprep.subr.bf16.mxu0 0
    %518 = vmatpush1.bf16.msra.mxu0 0
    %519 = vmatprep.subr.bf16.mxu0 0
    %520 = vmatpush1.bf16.msra.mxu0 0
    %521 = vmatprep.subr.bf16.mxu0 0
    %522 = vmatpush1.bf16.msra.mxu0 0
    %523 = vmatprep.subr.bf16.mxu0 0
    %524 = vmatpush1.bf16.msra.mxu0 0
    %525 = vmatprep.subr.bf16.mxu0 0
    %526 = vmatpush1.bf16.msra.mxu0 0
    %527 = vmatprep.subr.bf16.mxu0 0
    %528 = vmatpush1.bf16.msra.mxu0 0
    %529 = vmatprep.subr.bf16.mxu0 0
    %530 = vmatpush1.bf16.msra.mxu0 0
    %531 = vmatprep.subr.bf16.mxu0 0
    %532 = vmatpush1.bf16.msra.mxu0 0
    %533 = vmatprep.subr.bf16.mxu0 0
    %534 = vmatpush1.bf16.msra.mxu0 0
    %535 = vmatprep.subr.bf16.mxu0 0
    %536 = vmatpush1.bf16.msra.mxu0 0
    %537 = vmatprep.mubr.bf16.mxu0 0
    %538 = vmatmul.mubr.bf16.gmra.mrb[0].mxu0 %v499
    %v539 = vpop.f32.mrb[0].mxu0
    %v540 = vadd.f32 0.0, %v539
    %v541 = vpop.f32.mrb[0].mxu0
    %v542 = vpop.f32.mrb[0].mxu0
    %v543 = vpop.f32.mrb[0].mxu0
    %544 = vdwg.mxu0
    %545 = vrot.lane.b32.xlu0 %v350, 64
    %v546 = vpop.permute.xlu0 %545
    %v548 = vsel %vm372, %v495, 0
    %v551 = vsel %vm501, %v546, 0
    %553 = vmatprep.subr.bf16.mxu0 0
    %554 = vmatpush1.bf16.msra.mxu0 %v551
    %555 = vmatprep.subr.bf16.mxu0 0
    %556 = vmatpush1.bf16.msra.mxu0 0
    %557 = vmatprep.subr.bf16.mxu0 0
    %558 = vmatpush1.bf16.msra.mxu0 0
    %559 = vmatprep.subr.bf16.mxu0 0
    %560 = vmatpush1.bf16.msra.mxu0 0
    %561 = vmatprep.subr.bf16.mxu0 0
    %562 = vmatpush1.bf16.msra.mxu0 0
    %563 = vmatprep.subr.bf16.mxu0 0
    %564 = vmatpush1.bf16.msra.mxu0 0
    %565 = vmatprep.subr.bf16.mxu0 0
    %566 = vmatpush1.bf16.msra.mxu0 0
    %567 = vmatprep.subr.bf16.mxu0 0
    %568 = vmatpush1.bf16.msra.mxu0 0
    %569 = vmatprep.subr.bf16.mxu0 0
    %570 = vmatpush1.bf16.msra.mxu0 0
    %571 = vmatprep.subr.bf16.mxu0 0
    %572 = vmatpush1.bf16.msra.mxu0 0
    %573 = vmatprep.subr.bf16.mxu0 0
    %574 = vmatpush1.bf16.msra.mxu0 0
    %575 = vmatprep.subr.bf16.mxu0 0
    %576 = vmatpush1.bf16.msra.mxu0 0
    %577 = vmatprep.subr.bf16.mxu0 0
    %578 = vmatpush1.bf16.msra.mxu0 0
    %579 = vmatprep.subr.bf16.mxu0 0
    %580 = vmatpush1.bf16.msra.mxu0 0
    %581 = vmatprep.subr.bf16.mxu0 0
    %582 = vmatpush1.bf16.msra.mxu0 0
    %583 = vmatprep.subr.bf16.mxu0 0
    %584 = vmatpush1.bf16.msra.mxu0 0
    %585 = vmatprep.mubr.bf16.mxu0 0
    %586 = vmatmul.mubr.bf16.gmra.mrb[0].mxu0 %v548
    %v587 = vpop.f32.mrb[0].mxu0
    %v588 = vadd.f32 0.0, %v587
    %v589 = vpop.f32.mrb[0].mxu0
    %v590 = vpop.f32.mrb[0].mxu0
    %v591 = vpop.f32.mrb[0].mxu0
    %592 = vdwg.mxu0
    %593 = vrot.lane.b32.xlu0 %v349, 120
    %v594 = vpop.permute.xlu0 %593
    %595 = vrot.lane.b32.xlu0 %v349, 88
    %v596 = vpop.permute.xlu0 %595
    %v598 = vsel %vm372, %v594, 0
    %v601 = vsel %vm372, %v596, 0
    %603 = vmatprep.subr.bf16.mxu0 0
    %604 = vmatpush1.bf16.xpose.msra.mxu0 %v601
    %605 = vmatprep.subr.bf16.mxu0 0
    %606 = vmatpush1.bf16.xpose.msra.mxu0 0
    %607 = vmatprep.subr.bf16.mxu0 0
    %608 = vmatpush1.bf16.xpose.msra.mxu0 0
    %609 = vmatprep.subr.bf16.mxu0 0
    %610 = vmatpush1.bf16.xpose.msra.mxu0 0
    %611 = vmatprep.subr.bf16.mxu0 0
    %612 = vmatpush1.bf16.xpose.msra.mxu0 0
    %613 = vmatprep.subr.bf16.mxu0 0
    %614 = vmatpush1.bf16.xpose.msra.mxu0 0
    %615 = vmatprep.subr.bf16.mxu0 0
    %616 = vmatpush1.bf16.xpose.msra.mxu0 0
    %617 = vmatprep.subr.bf16.mxu0 0
    %618 = vmatpush1.bf16.xpose.msra.mxu0 0
    %619 = vmatprep.subr.bf16.mxu0 0
    %620 = vmatpush1.bf16.xpose.msra.mxu0 0
    %621 = vmatprep.subr.bf16.mxu0 0
    %622 = vmatpush1.bf16.xpose.msra.mxu0 0
    %623 = vmatprep.subr.bf16.mxu0 0
    %624 = vmatpush1.bf16.xpose.msra.mxu0 0
    %625 = vmatprep.subr.bf16.mxu0 0
    %626 = vmatpush1.bf16.xpose.msra.mxu0 0
    %627 = vmatprep.subr.bf16.mxu0 0
    %628 = vmatpush1.bf16.xpose.msra.mxu0 0
    %629 = vmatprep.subr.bf16.mxu0 0
    %630 = vmatpush1.bf16.xpose.msra.mxu0 0
    %631 = vmatprep.subr.bf16.mxu0 0
    %632 = vmatpush1.bf16.xpose.msra.mxu0 0
    %633 = vmatprep.subr.bf16.mxu0 0
    %634 = vmatpush1.bf16.xpose.msra.mxu0 0
    %635 = vmatprep.mubr.bf16.mxu0 0
    %636 = vmatmul.mubr.bf16.gmra.mrb[0].mxu0 %v598
    %v637 = vpop.f32.mrb[0].mxu0
    %v638 = vadd.f32 0.0, %v637
    %v639 = vpop.f32.mrb[0].mxu0
    %v640 = vpop.f32.mrb[0].mxu0
    %v641 = vpop.f32.mrb[0].mxu0
    %642 = vdwg.mxu0
    %643 = vrot.lane.b32.xlu0 %v350, 120
    %v644 = vpop.permute.xlu0 %643
    %645 = vrot.lane.b32.xlu0 %v350, 88
    %v646 = vpop.permute.xlu0 %645
    %v648 = vsel %vm372, %v644, 0
    %v651 = vsel %vm372, %v646, 0
    %653 = vmatprep.subr.bf16.mxu0 0
    %654 = vmatpush1.bf16.xpose.msra.mxu0 %v651
    %655 = vmatprep.subr.bf16.mxu0 0
    %656 = vmatpush1.bf16.xpose.msra.mxu0 0
    %657 = vmatprep.subr.bf16.mxu0 0
    %658 = vmatpush1.bf16.xpose.msra.mxu0 0
    %659 = vmatprep.subr.bf16.mxu0 0
    %660 = vmatpush1.bf16.xpose.msra.mxu0 0
    %661 = vmatprep.subr.bf16.mxu0 0
    %662 = vmatpush1.bf16.xpose.msra.mxu0 0
    %663 = vmatprep.subr.bf16.mxu0 0
    %664 = vmatpush1.bf16.xpose.msra.mxu0 0
    %665 = vmatprep.subr.bf16.mxu0 0
    %666 = vmatpush1.bf16.xpose.msra.mxu0 0
    %667 = vmatprep.subr.bf16.mxu0 0
    %668 = vmatpush1.bf16.xpose.msra.mxu0 0
    %669 = vmatprep.subr.bf16.mxu0 0
    %670 = vmatpush1.bf16.xpose.msra.mxu0 0
    %671 = vmatprep.subr.bf16.mxu0 0
    %672 = vmatpush1.bf16.xpose.msra.mxu0 0
    %673 = vmatprep.subr.bf16.mxu0 0
    %674 = vmatpush1.bf16.xpose.msra.mxu0 0
    %675 = vmatprep.subr.bf16.mxu0 0
    %676 = vmatpush1.bf16.xpose.msra.mxu0 0
    %677 = vmatprep.subr.bf16.mxu0 0
    %678 = vmatpush1.bf16.xpose.msra.mxu0 0
    %679 = vmatprep.subr.bf16.mxu0 0
    %680 = vmatpush1.bf16.xpose.msra.mxu0 0
    %681 = vmatprep.subr.bf16.mxu0 0
    %682 = vmatpush1.bf16.xpose.msra.mxu0 0
    %683 = vmatprep.subr.bf16.mxu0 0
    %684 = vmatpush1.bf16.xpose.msra.mxu0 0
    %685 = vmatprep.mubr.bf16.mxu0 0
    %686 = vmatmul.mubr.bf16.gmra.mrb[0].mxu0 %v648
    %v687 = vpop.f32.mrb[0].mxu0
    %v688 = vadd.f32 0.0, %v687
    %v689 = vpop.f32.mrb[0].mxu0
    %v690 = vpop.f32.mrb[0].mxu0
    %v691 = vpop.f32.mrb[0].mxu0
    %692 = vdwg.mxu0
    %v693 = vmul.f32 %v638, 0.35355338
    %v694 = vmul.f32 %v688, 0.35355338
    %v695 = vadd.f32 %v693, %v362
    %v696 = vadd.f32 %v694, %v366
    %v697 = vsel %vm372, %v695, -inf
    %698 = vmax.xlane.f32.xlu0 %v697
    %v699 = vpop.xlane.xlu0 %698
    %v700 = vsel %vm372, %v696, -inf
    %701 = vmax.xlane.f32.xlu0 %v700
    %v702 = vpop.xlane.xlu0 %701
    %v703 = vsub.f32 %v695, %v699
    %v704 = vsub.f32 %v696, %v702
    %v705 = vmul.f32 %v703, 1.442695
    %v706 = vpow.pop %v705
    %v707 = vmul.f32 %v704, 1.442695
    %v708 = vpow.pop %v707
    %v709 = vsel %vm372, %v706, 0.0
    %710 = vadd.xlane.f32.xlu0 %v709
    %v711 = vpop.xlane.xlu0 %710
    %v712 = vsel %vm372, %v708, 0.0
    %713 = vadd.xlane.f32.xlu0 %v712
    %v714 = vpop.xlane.xlu0 %713
    %v715 = vrcp.pop %v711
    %v716 = vrcp.pop %v714
    %v717 = vmul.f32 %v706, %v715
    %v718 = vmul.f32 %v708, %v716
    %v719 = vpack.c.bf16 %v717, %v717
    %v720 = vpack.c.bf16 %v718, %v718
    %721 = vrot.lane.b32.xlu0 %v349, 56
    %v722 = vpop.permute.xlu0 %721
    %v724 = vsel %vm372, %v719, 0
    %v727 = vsel %vm501, %v722, 0
    %729 = vmatprep.subr.bf16.mxu0 0
    %730 = vmatpush1.bf16.msra.mxu0 %v727
    %731 = vmatprep.subr.bf16.mxu0 0
    %732 = vmatpush1.bf16.msra.mxu0 0
    %733 = vmatprep.subr.bf16.mxu0 0
    %734 = vmatpush1.bf16.msra.mxu0 0
    %735 = vmatprep.subr.bf16.mxu0 0
    %736 = vmatpush1.bf16.msra.mxu0 0
    %737 = vmatprep.subr.bf16.mxu0 0
    %738 = vmatpush1.bf16.msra.mxu0 0
    %739 = vmatprep.subr.bf16.mxu0 0
    %740 = vmatpush1.bf16.msra.mxu0 0
    %741 = vmatprep.subr.bf16.mxu0 0
    %742 = vmatpush1.bf16.msra.mxu0 0
    %743 = vmatprep.subr.bf16.mxu0 0
    %744 = vmatpush1.bf16.msra.mxu0 0
    %745 = vmatprep.subr.bf16.mxu0 0
    %746 = vmatpush1.bf16.msra.mxu0 0
    %747 = vmatprep.subr.bf16.mxu0 0
    %748 = vmatpush1.bf16.msra.mxu0 0
    %749 = vmatprep.subr.bf16.mxu0 0
    %750 = vmatpush1.bf16.msra.mxu0 0
    %751 = vmatprep.subr.bf16.mxu0 0
    %752 = vmatpush1.bf16.msra.mxu0 0
    %753 = vmatprep.subr.bf16.mxu0 0
    %754 = vmatpush1.bf16.msra.mxu0 0
    %755 = vmatprep.subr.bf16.mxu0 0
    %756 = vmatpush1.bf16.msra.mxu0 0
    %757 = vmatprep.subr.bf16.mxu0 0
    %758 = vmatpush1.bf16.msra.mxu0 0
    %759 = vmatprep.subr.bf16.mxu0 0
    %760 = vmatpush1.bf16.msra.mxu0 0
    %761 = vmatprep.mubr.bf16.mxu0 0
    %762 = vmatmul.mubr.bf16.gmra.mrb[0].mxu0 %v724
    %v763 = vpop.f32.mrb[0].mxu0
    %v764 = vadd.f32 0.0, %v763
    %v765 = vpop.f32.mrb[0].mxu0
    %v766 = vpop.f32.mrb[0].mxu0
    %v767 = vpop.f32.mrb[0].mxu0
    %768 = vdwg.mxu0
    %769 = vrot.lane.b32.xlu0 %v350, 56
    %v770 = vpop.permute.xlu0 %769
    %v772 = vsel %vm372, %v720, 0
    %v775 = vsel %vm501, %v770, 0
    %777 = vmatprep.subr.bf16.mxu0 0
    %778 = vmatpush1.bf16.msra.mxu0 %v775
    %779 = vmatprep.subr.bf16.mxu0 0
    %780 = vmatpush1.bf16.msra.mxu0 0
    %781 = vmatprep.subr.bf16.mxu0 0
    %782 = vmatpush1.bf16.msra.mxu0 0
    %783 = vmatprep.subr.bf16.mxu0 0
    %784 = vmatpush1.bf16.msra.mxu0 0
    %785 = vmatprep.subr.bf16.mxu0 0
    %786 = vmatpush1.bf16.msra.mxu0 0
    %787 = vmatprep.subr.bf16.mxu0 0
    %788 = vmatpush1.bf16.msra.mxu0 0
    %789 = vmatprep.subr.bf16.mxu0 0
    %790 = vmatpush1.bf16.msra.mxu0 0
    %791 = vmatprep.subr.bf16.mxu0 0
    %792 = vmatpush1.bf16.msra.mxu0 0
    %793 = vmatprep.subr.bf16.mxu0 0
    %794 = vmatpush1.bf16.msra.mxu0 0
    %795 = vmatprep.subr.bf16.mxu0 0
    %796 = vmatpush1.bf16.msra.mxu0 0
    %797 = vmatprep.subr.bf16.mxu0 0
    %798 = vmatpush1.bf16.msra.mxu0 0
    %799 = vmatprep.subr.bf16.mxu0 0
    %800 = vmatpush1.bf16.msra.mxu0 0
    %801 = vmatprep.subr.bf16.mxu0 0
    %802 = vmatpush1.bf16.msra.mxu0 0
    %803 = vmatprep.subr.bf16.mxu0 0
    %804 = vmatpush1.bf16.msra.mxu0 0
    %805 = vmatprep.subr.bf16.mxu0 0
    %806 = vmatpush1.bf16.msra.mxu0 0
    %807 = vmatprep.subr.bf16.mxu0 0
    %808 = vmatpush1.bf16.msra.mxu0 0
    %809 = vmatprep.mubr.bf16.mxu0 0
    %810 = vmatmul.mubr.bf16.gmra.mrb[0].mxu0 %v772
    %v811 = vpop.f32.mrb[0].mxu0
    %v812 = vadd.f32 0.0, %v811
    %v813 = vpop.f32.mrb[0].mxu0
    %v814 = vpop.f32.mrb[0].mxu0
    %v815 = vpop.f32.mrb[0].mxu0
    %816 = vdwg.mxu0
    %817 = vrot.lane.b32.xlu0 %v349, 112
    %v818 = vpop.permute.xlu0 %817
    %819 = vrot.lane.b32.xlu0 %v349, 80
    %v820 = vpop.permute.xlu0 %819
    %v822 = vsel %vm372, %v818, 0
    %v825 = vsel %vm372, %v820, 0
    %827 = vmatprep.subr.bf16.mxu0 0
    %828 = vmatpush1.bf16.xpose.msra.mxu0 %v825
    %829 = vmatprep.subr.bf16.mxu0 0
    %830 = vmatpush1.bf16.xpose.msra.mxu0 0
    %831 = vmatprep.subr.bf16.mxu0 0
    %832 = vmatpush1.bf16.xpose.msra.mxu0 0
    %833 = vmatprep.subr.bf16.mxu0 0
    %834 = vmatpush1.bf16.xpose.msra.mxu0 0
    %835 = vmatprep.subr.bf16.mxu0 0
    %836 = vmatpush1.bf16.xpose.msra.mxu0 0
    %837 = vmatprep.subr.bf16.mxu0 0
    %838 = vmatpush1.bf16.xpose.msra.mxu0 0
    %839 = vmatprep.subr.bf16.mxu0 0
    %840 = vmatpush1.bf16.xpose.msra.mxu0 0
    %841 = vmatprep.subr.bf16.mxu0 0
    %842 = vmatpush1.bf16.xpose.msra.mxu0 0
    %843 = vmatprep.subr.bf16.mxu0 0
    %844 = vmatpush1.bf16.xpose.msra.mxu0 0
    %845 = vmatprep.subr.bf16.mxu0 0
    %846 = vmatpush1.bf16.xpose.msra.mxu0 0
    %847 = vmatprep.subr.bf16.mxu0 0
    %848 = vmatpush1.bf16.xpose.msra.mxu0 0
    %849 = vmatprep.subr.bf16.mxu0 0
    %850 = vmatpush1.bf16.xpose.msra.mxu0 0
    %851 = vmatprep.subr.bf16.mxu0 0
    %852 = vmatpush1.bf16.xpose.msra.mxu0 0
    %853 = vmatprep.subr.bf16.mxu0 0
    %854 = vmatpush1.bf16.xpose.msra.mxu0 0
    %855 = vmatprep.subr.bf16.mxu0 0
    %856 = vmatpush1.bf16.xpose.msra.mxu0 0
    %857 = vmatprep.subr.bf16.mxu0 0
    %858 = vmatpush1.bf16.xpose.msra.mxu0 0
    %859 = vmatprep.mubr.bf16.mxu0 0
    %860 = vmatmul.mubr.bf16.gmra.mrb[0].mxu0 %v822
    %v861 = vpop.f32.mrb[0].mxu0
    %v862 = vadd.f32 0.0, %v861
    %v863 = vpop.f32.mrb[0].mxu0
    %v864 = vpop.f32.mrb[0].mxu0
    %v865 = vpop.f32.mrb[0].mxu0
    %866 = vdwg.mxu0
    %867 = vrot.lane.b32.xlu0 %v350, 112
    %v868 = vpop.permute.xlu0 %867
    %869 = vrot.lane.b32.xlu0 %v350, 80
    %v870 = vpop.permute.xlu0 %869
    %v872 = vsel %vm372, %v868, 0
    %v875 = vsel %vm372, %v870, 0
    %877 = vmatprep.subr.bf16.mxu0 0
    %878 = vmatpush1.bf16.xpose.msra.mxu0 %v875
    %879 = vmatprep.subr.bf16.mxu0 0
    %880 = vmatpush1.bf16.xpose.msra.mxu0 0
    %881 = vmatprep.subr.bf16.mxu0 0
    %882 = vmatpush1.bf16.xpose.msra.mxu0 0
    %883 = vmatprep.subr.bf16.mxu0 0
    %884 = vmatpush1.bf16.xpose.msra.mxu0 0
    %885 = vmatprep.subr.bf16.mxu0 0
    %886 = vmatpush1.bf16.xpose.msra.mxu0 0
    %887 = vmatprep.subr.bf16.mxu0 0
    %888 = vmatpush1.bf16.xpose.msra.mxu0 0
    %889 = vmatprep.subr.bf16.mxu0 0
    %890 = vmatpush1.bf16.xpose.msra.mxu0 0
    %891 = vmatprep.subr.bf16.mxu0 0
    %892 = vmatpush1.bf16.xpose.msra.mxu0 0
    %893 = vmatprep.subr.bf16.mxu0 0
    %894 = vmatpush1.bf16.xpose.msra.mxu0 0
    %895 = vmatprep.subr.bf16.mxu0 0
    %896 = vmatpush1.bf16.xpose.msra.mxu0 0
    %897 = vmatprep.subr.bf16.mxu0 0
    %898 = vmatpush1.bf16.xpose.msra.mxu0 0
    %899 = vmatprep.subr.bf16.mxu0 0
    %900 = vmatpush1.bf16.xpose.msra.mxu0 0
    %901 = vmatprep.subr.bf16.mxu0 0
    %902 = vmatpush1.bf16.xpose.msra.mxu0 0
    %903 = vmatprep.subr.bf16.mxu0 0
    %904 = vmatpush1.bf16.xpose.msra.mxu0 0
    %905 = vmatprep.subr.bf16.mxu0 0
    %906 = vmatpush1.bf16.xpose.msra.mxu0 0
    %907 = vmatprep.subr.bf16.mxu0 0
    %908 = vmatpush1.bf16.xpose.msra.mxu0 0
    %909 = vmatprep.mubr.bf16.mxu0 0
    %910 = vmatmul.mubr.bf16.gmra.mrb[0].mxu0 %v872
    %v911 = vpop.f32.mrb[0].mxu0
    %v912 = vadd.f32 0.0, %v911
    %v913 = vpop.f32.mrb[0].mxu0
    %v914 = vpop.f32.mrb[0].mxu0
    %v915 = vpop.f32.mrb[0].mxu0
    %916 = vdwg.mxu0
    %v917 = vmul.f32 %v862, 0.35355338
    %v918 = vmul.f32 %v912, 0.35355338
    %v919 = vadd.f32 %v917, %v362
    %v920 = vadd.f32 %v918, %v366
    %v921 = vsel %vm372, %v919, -inf
    %922 = vmax.xlane.f32.xlu0 %v921
    %v923 = vpop.xlane.xlu0 %922
    %v924 = vsel %vm372, %v920, -inf
    %925 = vmax.xlane.f32.xlu0 %v924
    %v926 = vpop.xlane.xlu0 %925
    %v927 = vsub.f32 %v919, %v923
    %v928 = vsub.f32 %v920, %v926
    %v929 = vmul.f32 %v927, 1.442695
    %v930 = vpow.pop %v929
    %v931 = vmul.f32 %v928, 1.442695
    %v932 = vpow.pop %v931
    %v933 = vsel %vm372, %v930, 0.0
    %934 = vadd.xlane.f32.xlu0 %v933
    %v935 = vpop.xlane.xlu0 %934
    %v936 = vsel %vm372, %v932, 0.0
    %937 = vadd.xlane.f32.xlu0 %v936
    %v938 = vpop.xlane.xlu0 %937
    %v939 = vrcp.pop %v935
    %v940 = vrcp.pop %v938
    %v941 = vmul.f32 %v930, %v939
    %v942 = vmul.f32 %v932, %v940
    %v943 = vpack.c.bf16 %v941, %v941
    %v944 = vpack.c.bf16 %v942, %v942
    %945 = vrot.lane.b32.xlu0 %v349, 48
    %v946 = vpop.permute.xlu0 %945
    %v948 = vsel %vm372, %v943, 0
    %v951 = vsel %vm501, %v946, 0
    %953 = vmatprep.subr.bf16.mxu0 0
    %954 = vmatpush1.bf16.msra.mxu0 %v951
    %955 = vmatprep.subr.bf16.mxu0 0
    %956 = vmatpush1.bf16.msra.mxu0 0
    %957 = vmatprep.subr.bf16.mxu0 0
    %958 = vmatpush1.bf16.msra.mxu0 0
    %959 = vmatprep.subr.bf16.mxu0 0
    %960 = vmatpush1.bf16.msra.mxu0 0
    %961 = vmatprep.subr.bf16.mxu0 0
    %962 = vmatpush1.bf16.msra.mxu0 0
    %963 = vmatprep.subr.bf16.mxu0 0
    %964 = vmatpush1.bf16.msra.mxu0 0
    %965 = vmatprep.subr.bf16.mxu0 0
    %966 = vmatpush1.bf16.msra.mxu0 0
    %967 = vmatprep.subr.bf16.mxu0 0
    %968 = vmatpush1.bf16.msra.mxu0 0
    %969 = vmatprep.subr.bf16.mxu0 0
    %970 = vmatpush1.bf16.msra.mxu0 0
    %971 = vmatprep.subr.bf16.mxu0 0
    %972 = vmatpush1.bf16.msra.mxu0 0
    %973 = vmatprep.subr.bf16.mxu0 0
    %974 = vmatpush1.bf16.msra.mxu0 0
    %975 = vmatprep.subr.bf16.mxu0 0
    %976 = vmatpush1.bf16.msra.mxu0 0
    %977 = vmatprep.subr.bf16.mxu0 0
    %978 = vmatpush1.bf16.msra.mxu0 0
    %979 = vmatprep.subr.bf16.mxu0 0
    %980 = vmatpush1.bf16.msra.mxu0 0
    %981 = vmatprep.subr.bf16.mxu0 0
    %982 = vmatpush1.bf16.msra.mxu0 0
    %983 = vmatprep.subr.bf16.mxu0 0
    %984 = vmatpush1.bf16.msra.mxu0 0
    %985 = vmatprep.mubr.bf16.mxu0 0
    %986 = vmatmul.mubr.bf16.gmra.mrb[0].mxu0 %v948
    %v987 = vpop.f32.mrb[0].mxu0
    %v988 = vadd.f32 0.0, %v987
    %v989 = vpop.f32.mrb[0].mxu0
    %v990 = vpop.f32.mrb[0].mxu0
    %v991 = vpop.f32.mrb[0].mxu0
    %992 = vdwg.mxu0
    %993 = vrot.lane.b32.xlu0 %v350, 48
    %v994 = vpop.permute.xlu0 %993
    %v996 = vsel %vm372, %v944, 0
    %v999 = vsel %vm501, %v994, 0
    %1001 = vmatprep.subr.bf16.mxu0 0
    %1002 = vmatpush1.bf16.msra.mxu0 %v999
    %1003 = vmatprep.subr.bf16.mxu0 0
    %1004 = vmatpush1.bf16.msra.mxu0 0
    %1005 = vmatprep.subr.bf16.mxu0 0
    %1006 = vmatpush1.bf16.msra.mxu0 0
    %1007 = vmatprep.subr.bf16.mxu0 0
    %1008 = vmatpush1.bf16.msra.mxu0 0
    %1009 = vmatprep.subr.bf16.mxu0 0
    %1010 = vmatpush1.bf16.msra.mxu0 0
    %1011 = vmatprep.subr.bf16.mxu0 0
    %1012 = vmatpush1.bf16.msra.mxu0 0
    %1013 = vmatprep.subr.bf16.mxu0 0
    %1014 = vmatpush1.bf16.msra.mxu0 0
    %1015 = vmatprep.subr.bf16.mxu0 0
    %1016 = vmatpush1.bf16.msra.mxu0 0
    %1017 = vmatprep.subr.bf16.mxu0 0
    %1018 = vmatpush1.bf16.msra.mxu0 0
    %1019 = vmatprep.subr.bf16.mxu0 0
    %1020 = vmatpush1.bf16.msra.mxu0 0
    %1021 = vmatprep.subr.bf16.mxu0 0
    %1022 = vmatpush1.bf16.msra.mxu0 0
    %1023 = vmatprep.subr.bf16.mxu0 0
    %1024 = vmatpush1.bf16.msra.mxu0 0
    %1025 = vmatprep.subr.bf16.mxu0 0
    %1026 = vmatpush1.bf16.msra.mxu0 0
    %1027 = vmatprep.subr.bf16.mxu0 0
    %1028 = vmatpush1.bf16.msra.mxu0 0
    %1029 = vmatprep.subr.bf16.mxu0 0
    %1030 = vmatpush1.bf16.msra.mxu0 0
    %1031 = vmatprep.subr.bf16.mxu0 0
    %1032 = vmatpush1.bf16.msra.mxu0 0
    %1033 = vmatprep.mubr.bf16.mxu0 0
    %1034 = vmatmul.mubr.bf16.gmra.mrb[0].mxu0 %v996
    %v1035 = vpop.f32.mrb[0].mxu0
    %v1036 = vadd.f32 0.0, %v1035
    %v1037 = vpop.f32.mrb[0].mxu0
    %v1038 = vpop.f32.mrb[0].mxu0
    %v1039 = vpop.f32.mrb[0].mxu0
    %1040 = vdwg.mxu0
    %1041 = vrot.lane.b32.xlu0 %v349, 104
    %v1042 = vpop.permute.xlu0 %1041
    %1043 = vrot.lane.b32.xlu0 %v349, 72
    %v1044 = vpop.permute.xlu0 %1043
    %v1046 = vsel %vm372, %v1042, 0
    %v1049 = vsel %vm372, %v1044, 0
    %1051 = vmatprep.subr.bf16.mxu0 0
    %1052 = vmatpush1.bf16.xpose.msra.mxu0 %v1049
    %1053 = vmatprep.subr.bf16.mxu0 0
    %1054 = vmatpush1.bf16.xpose.msra.mxu0 0
    %1055 = vmatprep.subr.bf16.mxu0 0
    %1056 = vmatpush1.bf16.xpose.msra.mxu0 0
    %1057 = vmatprep.subr.bf16.mxu0 0
    %1058 = vmatpush1.bf16.xpose.msra.mxu0 0
    %1059 = vmatprep.subr.bf16.mxu0 0
    %1060 = vmatpush1.bf16.xpose.msra.mxu0 0
    %1061 = vmatprep.subr.bf16.mxu0 0
    %1062 = vmatpush1.bf16.xpose.msra.mxu0 0
    %1063 = vmatprep.subr.bf16.mxu0 0
    %1064 = vmatpush1.bf16.xpose.msra.mxu0 0
    %1065 = vmatprep.subr.bf16.mxu0 0
    %1066 = vmatpush1.bf16.xpose.msra.mxu0 0
    %1067 = vmatprep.subr.bf16.mxu0 0
    %1068 = vmatpush1.bf16.xpose.msra.mxu0 0
    %1069 = vmatprep.subr.bf16.mxu0 0
    %1070 = vmatpush1.bf16.xpose.msra.mxu0 0
    %1071 = vmatprep.subr.bf16.mxu0 0
    %1072 = vmatpush1.bf16.xpose.msra.mxu0 0
    %1073 = vmatprep.subr.bf16.mxu0 0
    %1074 = vmatpush1.bf16.xpose.msra.mxu0 0
    %1075 = vmatprep.subr.bf16.mxu0 0
    %1076 = vmatpush1.bf16.xpose.msra.mxu0 0
    %1077 = vmatprep.subr.bf16.mxu0 0
    %1078 = vmatpush1.bf16.xpose.msra.mxu0 0
    %1079 = vmatprep.subr.bf16.mxu0 0
    %1080 = vmatpush1.bf16.xpose.msra.mxu0 0
    %1081 = vmatprep.subr.bf16.mxu0 0
    %1082 = vmatpush1.bf16.xpose.msra.mxu0 0
    %1083 = vmatprep.mubr.bf16.mxu0 0
    %1084 = vmatmul.mubr.bf16.gmra.mrb[0].mxu0 %v1046
    %v1085 = vpop.f32.mrb[0].mxu0
    %v1086 = vadd.f32 0.0, %v1085
    %v1087 = vpop.f32.mrb[0].mxu0
    %v1088 = vpop.f32.mrb[0].mxu0
    %v1089 = vpop.f32.mrb[0].mxu0
    %1090 = vdwg.mxu0
    %1091 = vrot.lane.b32.xlu0 %v350, 104
    %v1092 = vpop.permute.xlu0 %1091
    %1093 = vrot.lane.b32.xlu0 %v350, 72
    %v1094 = vpop.permute.xlu0 %1093
    %v1096 = vsel %vm372, %v1092, 0
    %v1099 = vsel %vm372, %v1094, 0
    %1101 = vmatprep.subr.bf16.mxu0 0
    %1102 = vmatpush1.bf16.xpose.msra.mxu0 %v1099
    %1103 = vmatprep.subr.bf16.mxu0 0
    %1104 = vmatpush1.bf16.xpose.msra.mxu0 0
    %1105 = vmatprep.subr.bf16.mxu0 0
    %1106 = vmatpush1.bf16.xpose.msra.mxu0 0
    %1107 = vmatprep.subr.bf16.mxu0 0
    %1108 = vmatpush1.bf16.xpose.msra.mxu0 0
    %1109 = vmatprep.subr.bf16.mxu0 0
    %1110 = vmatpush1.bf16.xpose.msra.mxu0 0
    %1111 = vmatprep.subr.bf16.mxu0 0
    %1112 = vmatpush1.bf16.xpose.msra.mxu0 0
    %1113 = vmatprep.subr.bf16.mxu0 0
    %1114 = vmatpush1.bf16.xpose.msra.mxu0 0
    %1115 = vmatprep.subr.bf16.mxu0 0
    %1116 = vmatpush1.bf16.xpose.msra.mxu0 0
    %1117 = vmatprep.subr.bf16.mxu0 0
    %1118 = vmatpush1.bf16.xpose.msra.mxu0 0
    %1119 = vmatprep.subr.bf16.mxu0 0
    %1120 = vmatpush1.bf16.xpose.msra.mxu0 0
    %1121 = vmatprep.subr.bf16.mxu0 0
    %1122 = vmatpush1.bf16.xpose.msra.mxu0 0
    %1123 = vmatprep.subr.bf16.mxu0 0
    %1124 = vmatpush1.bf16.xpose.msra.mxu0 0
    %1125 = vmatprep.subr.bf16.mxu0 0
    %1126 = vmatpush1.bf16.xpose.msra.mxu0 0
    %1127 = vmatprep.subr.bf16.mxu0 0
    %1128 = vmatpush1.bf16.xpose.msra.mxu0 0
    %1129 = vmatprep.subr.bf16.mxu0 0
    %1130 = vmatpush1.bf16.xpose.msra.mxu0 0
    %1131 = vmatprep.subr.bf16.mxu0 0
    %1132 = vmatpush1.bf16.xpose.msra.mxu0 0
    %1133 = vmatprep.mubr.bf16.mxu0 0
    %1134 = vmatmul.mubr.bf16.gmra.mrb[0].mxu0 %v1096
    %v1135 = vpop.f32.mrb[0].mxu0
    %v1136 = vadd.f32 0.0, %v1135
    %v1137 = vpop.f32.mrb[0].mxu0
    %v1138 = vpop.f32.mrb[0].mxu0
    %v1139 = vpop.f32.mrb[0].mxu0
    %1140 = vdwg.mxu0
    %v1141 = vmul.f32 %v1086, 0.35355338
    %v1142 = vmul.f32 %v1136, 0.35355338
    %v1143 = vadd.f32 %v1141, %v362
    %v1144 = vadd.f32 %v1142, %v366
    %v1145 = vsel %vm372, %v1143, -inf
    %1146 = vmax.xlane.f32.xlu0 %v1145
    %v1147 = vpop.xlane.xlu0 %1146
    %v1148 = vsel %vm372, %v1144, -inf
    %1149 = vmax.xlane.f32.xlu0 %v1148
    %v1150 = vpop.xlane.xlu0 %1149
    %v1151 = vsub.f32 %v1143, %v1147
    %v1152 = vsub.f32 %v1144, %v1150
    %v1153 = vmul.f32 %v1151, 1.442695
    %v1154 = vpow.pop %v1153
    %v1155 = vmul.f32 %v1152, 1.442695
    %v1156 = vpow.pop %v1155
    %v1157 = vsel %vm372, %v1154, 0.0
    %1158 = vadd.xlane.f32.xlu0 %v1157
    %v1159 = vpop.xlane.xlu0 %1158
    %v1160 = vsel %vm372, %v1156, 0.0
    %1161 = vadd.xlane.f32.xlu0 %v1160
    %v1162 = vpop.xlane.xlu0 %1161
    %v1163 = vrcp.pop %v1159
    %v1164 = vrcp.pop %v1162
    %v1165 = vmul.f32 %v1154, %v1163
    %v1166 = vmul.f32 %v1156, %v1164
    %v1167 = vpack.c.bf16 %v1165, %v1165
    %v1168 = vpack.c.bf16 %v1166, %v1166
    %1169 = vrot.lane.b32.xlu0 %v349, 40
    %v1170 = vpop.permute.xlu0 %1169
    %v1172 = vsel %vm372, %v1167, 0
    %v1175 = vsel %vm501, %v1170, 0
    %1177 = vmatprep.subr.bf16.mxu0 0
    %1178 = vmatpush1.bf16.msra.mxu0 %v1175
    %1179 = vmatprep.subr.bf16.mxu0 0
    %1180 = vmatpush1.bf16.msra.mxu0 0
    %1181 = vmatprep.subr.bf16.mxu0 0
    %1182 = vmatpush1.bf16.msra.mxu0 0
    %1183 = vmatprep.subr.bf16.mxu0 0
    %1184 = vmatpush1.bf16.msra.mxu0 0
    %1185 = vmatprep.subr.bf16.mxu0 0
    %1186 = vmatpush1.bf16.msra.mxu0 0
    %1187 = vmatprep.subr.bf16.mxu0 0
    %1188 = vmatpush1.bf16.msra.mxu0 0
    %1189 = vmatprep.subr.bf16.mxu0 0
    %1190 = vmatpush1.bf16.msra.mxu0 0
    %1191 = vmatprep.subr.bf16.mxu0 0
    %1192 = vmatpush1.bf16.msra.mxu0 0
    %1193 = vmatprep.subr.bf16.mxu0 0
    %1194 = vmatpush1.bf16.msra.mxu0 0
    %1195 = vmatprep.subr.bf16.mxu0 0
    %1196 = vmatpush1.bf16.msra.mxu0 0
    %1197 = vmatprep.subr.bf16.mxu0 0
    %1198 = vmatpush1.bf16.msra.mxu0 0
    %1199 = vmatprep.subr.bf16.mxu0 0
    %1200 = vmatpush1.bf16.msra.mxu0 0
    %1201 = vmatprep.subr.bf16.mxu0 0
    %1202 = vmatpush1.bf16.msra.mxu0 0
    %1203 = vmatprep.subr.bf16.mxu0 0
    %1204 = vmatpush1.bf16.msra.mxu0 0
    %1205 = vmatprep.subr.bf16.mxu0 0
    %1206 = vmatpush1.bf16.msra.mxu0 0
    %1207 = vmatprep.subr.bf16.mxu0 0
    %1208 = vmatpush1.bf16.msra.mxu0 0
    %1209 = vmatprep.mubr.bf16.mxu0 0
    %1210 = vmatmul.mubr.bf16.gmra.mrb[0].mxu0 %v1172
    %v1211 = vpop.f32.mrb[0].mxu0
    %v1212 = vadd.f32 0.0, %v1211
    %v1213 = vpop.f32.mrb[0].mxu0
    %v1214 = vpop.f32.mrb[0].mxu0
    %v1215 = vpop.f32.mrb[0].mxu0
    %1216 = vdwg.mxu0
    %1217 = vrot.lane.b32.xlu0 %v350, 40
    %v1218 = vpop.permute.xlu0 %1217
    %v1220 = vsel %vm372, %v1168, 0
    %v1223 = vsel %vm501, %v1218, 0
    %1225 = vmatprep.subr.bf16.mxu0 0
    %1226 = vmatpush1.bf16.msra.mxu0 %v1223
    %1227 = vmatprep.subr.bf16.mxu0 0
    %1228 = vmatpush1.bf16.msra.mxu0 0
    %1229 = vmatprep.subr.bf16.mxu0 0
    %1230 = vmatpush1.bf16.msra.mxu0 0
    %1231 = vmatprep.subr.bf16.mxu0 0
    %1232 = vmatpush1.bf16.msra.mxu0 0
    %1233 = vmatprep.subr.bf16.mxu0 0
    %1234 = vmatpush1.bf16.msra.mxu0 0
    %1235 = vmatprep.subr.bf16.mxu0 0
    %1236 = vmatpush1.bf16.msra.mxu0 0
    %1237 = vmatprep.subr.bf16.mxu0 0
    %1238 = vmatpush1.bf16.msra.mxu0 0
    %1239 = vmatprep.subr.bf16.mxu0 0
    %1240 = vmatpush1.bf16.msra.mxu0 0
    %1241 = vmatprep.subr.bf16.mxu0 0
    %1242 = vmatpush1.bf16.msra.mxu0 0
    %1243 = vmatprep.subr.bf16.mxu0 0
    %1244 = vmatpush1.bf16.msra.mxu0 0
    %1245 = vmatprep.subr.bf16.mxu0 0
    %1246 = vmatpush1.bf16.msra.mxu0 0
    %1247 = vmatprep.subr.bf16.mxu0 0
    %1248 = vmatpush1.bf16.msra.mxu0 0
    %1249 = vmatprep.subr.bf16.mxu0 0
    %1250 = vmatpush1.bf16.msra.mxu0 0
    %1251 = vmatprep.subr.bf16.mxu0 0
    %1252 = vmatpush1.bf16.msra.mxu0 0
    %1253 = vmatprep.subr.bf16.mxu0 0
    %1254 = vmatpush1.bf16.msra.mxu0 0
    %1255 = vmatprep.subr.bf16.mxu0 0
    %1256 = vmatpush1.bf16.msra.mxu0 0
    %1257 = vmatprep.mubr.bf16.mxu0 0
    %1258 = vmatmul.mubr.bf16.gmra.mrb[0].mxu0 %v1220
    %v1259 = vpop.f32.mrb[0].mxu0
    %v1260 = vadd.f32 0.0, %v1259
    %v1261 = vpop.f32.mrb[0].mxu0
    %v1262 = vpop.f32.mrb[0].mxu0
    %v1263 = vpop.f32.mrb[0].mxu0
    %1264 = vdwg.mxu0
    %1267 = vrot.lane.b32.xlu0 %v764, 8
    %v1268 = vpop.permute.xlu0 %1267
    %1269 = vrot.lane.b32.xlu0 %v812, 8
    %v1270 = vpop.permute.xlu0 %1269
    %1275 = vrot.lane.b32.xlu0 %v988, 16
    %v1276 = vpop.permute.xlu0 %1275
    %1277 = vrot.lane.b32.xlu0 %v1036, 16
    %v1278 = vpop.permute.xlu0 %1277
    %1283 = vrot.lane.b32.xlu0 %v1212, 24
    %v1284 = vpop.permute.xlu0 %1283
    %1285 = vrot.lane.b32.xlu0 %v1260, 24
    %v1286 = vpop.permute.xlu0 %1285
    %v1289 = vsel %vm372, %v540, %v1268
    %v1290 = vsel %vm372, %v588, %v1270
    %vm1291 = vcmask 130048
    %v1292 = vsel %vm1291, %v1289, %v1276
    %v1293 = vsel %vm1291, %v1290, %v1278
    %vm1294 = vcmask 195584
    %v1295 = vsel %vm1294, %v1292, %v1284
    %v1296 = vsel %vm1294, %v1293, %v1286
    %v1297 = vpack.c.bf16 %v1296, %v1295
    %v1298 = vld [vmem:[#allocation11] sm:$0xf]
    %v1299 = vld [vmem:[#allocation11 + $0x4] sm:$0xf]
    %v1300 = vld [vmem:[#allocation11 + $0x8] sm:$0xf]
    %v1301 = vld [vmem:[#allocation11 + $0xc] sm:$0xf]
    %v1302 = vld [vmem:[#allocation13] sm:$0x1]
    %v1304 = vlaneseq
    %v1305 = vshrl.u32 %v1304, 7
    %v1306 = vsub.s32 0, %v1305
    %v1307 = vrot.slane %v1302, %v1306
    %v1313 = vunpack.c.l.b16 %v1298
    %v1314 = vunpack.c.l.b16 %v1299
    %v1315 = vunpack.c.l.b16 %v1300
    %v1316 = vunpack.c.l.b16 %v1301
    %v1317 = vpack.c.b16 %v1314, %v1313
    %v1318 = vpack.c.b16 %v1316, %v1315
    %v1322 = vsel %vm175, %v1297, 0
    %1324 = vmatprep.subr.bf16.mxu0 0
    %1325 = vmatpush1.bf16.msra.mxu0 %v1317
    %1326 = vmatprep.subr.bf16.mxu0 0
    %1327 = vmatpush1.bf16.msra.mxu0 %v1318
    %1328 = vmatprep.subr.bf16.mxu0 0
    %1329 = vmatpush1.bf16.msra.mxu0 0
    %1330 = vmatprep.subr.bf16.mxu0 0
    %1331 = vmatpush1.bf16.msra.mxu0 0
    %1332 = vmatprep.subr.bf16.mxu0 0
    %1333 = vmatpush1.bf16.msra.mxu0 0
    %1334 = vmatprep.subr.bf16.mxu0 0
    %1335 = vmatpush1.bf16.msra.mxu0 0
    %1336 = vmatprep.subr.bf16.mxu0 0
    %1337 = vmatpush1.bf16.msra.mxu0 0
    %1338 = vmatprep.subr.bf16.mxu0 0
    %1339 = vmatpush1.bf16.msra.mxu0 0
    %1340 = vmatprep.subr.bf16.mxu0 0
    %1341 = vmatpush1.bf16.msra.mxu0 0
    %1342 = vmatprep.subr.bf16.mxu0 0
    %1343 = vmatpush1.bf16.msra.mxu0 0
    %1344 = vmatprep.subr.bf16.mxu0 0
    %1345 = vmatpush1.bf16.msra.mxu0 0
    %1346 = vmatprep.subr.bf16.mxu0 0
    %1347 = vmatpush1.bf16.msra.mxu0 0
    %1348 = vmatprep.subr.bf16.mxu0 0
    %1349 = vmatpush1.bf16.msra.mxu0 0
    %1350 = vmatprep.subr.bf16.mxu0 0
    %1351 = vmatpush1.bf16.msra.mxu0 0
    %1352 = vmatprep.subr.bf16.mxu0 0
    %1353 = vmatpush1.bf16.msra.mxu0 0
    %1354 = vmatprep.subr.bf16.mxu0 0
    %1355 = vmatpush1.bf16.msra.mxu0 0
    %1356 = vmatprep.mubr.bf16.mxu0 0
    %1357 = vmatmul.mubr.bf16.gmra.mrb[0].mxu0 %v1322
    %v1358 = vpop.f32.mrb[0].mxu0
    %v1359 = vadd.f32 %v1307, %v1358
    %v1360 = vpop.f32.mrb[0].mxu0
    %v1361 = vpop.f32.mrb[0].mxu0
    %v1362 = vadd.f32 %v1307, %v1361
    %v1363 = vpop.f32.mrb[0].mxu0
    %1364 = vdwg.mxu0
    %v1365 = vadd.f32 %v275, %v1359
    %v1366 = vadd.f32 %v278, %v1362
    %v1367 = vsel %vm175, %v1365, 0.0
    %1368 = vadd.xlane.f32.xlu0 %v1367
    %v1369 = vpop.xlane.xlu0 %1368
    %v1370 = vsel %vm175, %v1366, 0.0
    %1371 = vadd.xlane.f32.xlu0 %v1370
    %v1372 = vpop.xlane.xlu0 %1371
    %v1373 = vrcp.pop 32.0
    %v1374 = vmul.f32 %v1369, %v1373
    %v1375 = vmul.f32 %v1372, %v1373
    %v1376 = vsub.f32 %v1365, %v1374
    %v1377 = vsub.f32 %v1366, %v1375
    %v1378 = vmul.f32 %v1376, %v1376
    %v1379 = vmul.f32 %v1377, %v1377
    %v1380 = vsel %vm175, %v1378, 0.0
    %1381 = vadd.xlane.f32.xlu0 %v1380
    %v1382 = vpop.xlane.xlu0 %1381
    %v1383 = vsel %vm175, %v1379, 0.0
    %1384 = vadd.xlane.f32.xlu0 %v1383
    %v1385 = vpop.xlane.xlu0 %1384
    %v1386 = vmul.f32 %v1382, %v1373
    %v1387 = vmul.f32 %v1385, %v1373
    %v1388 = vadd.f32 %v1386, 1e-05
    %v1389 = vadd.f32 %v1387, 1e-05
    %v1390 = vrsqrt.pop %v1388
    %v1391 = vrsqrt.pop %v1389
    %v1392 = vmul.f32 %v1376, %v1390
    %v1393 = vmul.f32 %v1377, %v1391
    %v1394 = vld [vmem:[#allocation14] sm:$0x1]
    %v1396 = vlaneseq
    %v1397 = vshrl.u32 %v1396, 7
    %v1398 = vsub.s32 0, %v1397
    %v1399 = vrot.slane %v1394, %v1398
    %v1401 = vmul.f32 %v1392, %v1399
    %v1402 = vmul.f32 %v1393, %v1399
    %v1403 = vld [vmem:[%s10] sm:$0x1]
    %v1405 = vlaneseq
    %v1406 = vshrl.u32 %v1405, 7
    %v1407 = vsub.s32 0, %v1406
    %v1408 = vrot.slane %v1403, %v1407
    %v1410 = vadd.f32 %v1401, %v1408
    %v1411 = vadd.f32 %v1402, %v1408
    %v1412 = vpack.c.bf16 %v1411, %v1410
    %v1413 = vld [vmem:[%s11] sm:$0xf]
    %v1414 = vld [vmem:[%s11 + $0x4] sm:$0xf]
    %v1415 = vld [vmem:[%s11 + $0x8] sm:$0xf]
    %v1416 = vld [vmem:[%s11 + $0xc] sm:$0xf]
    %v1421 = vunpack.c.l.b16 %v1413
    %v1422 = vunpack.c.l.b16 %v1414
    %v1423 = vunpack.c.l.b16 %v1415
    %v1424 = vunpack.c.l.b16 %v1416
    %v1425 = vpack.c.b16 %v1422, %v1421
    %v1426 = vpack.c.b16 %v1424, %v1423
    %v1430 = vsel %vm175, %v1412, 0
    %1432 = vmatprep.subr.bf16.mxu0 0
    %1433 = vmatpush1.bf16.msra.mxu0 %v1425
    %1434 = vmatprep.subr.bf16.mxu0 0
    %1435 = vmatpush1.bf16.msra.mxu0 %v1426
    %1436 = vmatprep.subr.bf16.mxu0 0
    %1437 = vmatpush1.bf16.msra.mxu0 0
    %1438 = vmatprep.subr.bf16.mxu0 0
    %1439 = vmatpush1.bf16.msra.mxu0 0
    %1440 = vmatprep.subr.bf16.mxu0 0
    %1441 = vmatpush1.bf16.msra.mxu0 0
    %1442 = vmatprep.subr.bf16.mxu0 0
    %1443 = vmatpush1.bf16.msra.mxu0 0
    %1444 = vmatprep.subr.bf16.mxu0 0
    %1445 = vmatpush1.bf16.msra.mxu0 0
    %1446 = vmatprep.subr.bf16.mxu0 0
    %1447 = vmatpush1.bf16.msra.mxu0 0
    %1448 = vmatprep.subr.bf16.mxu0 0
    %1449 = vmatpush1.bf16.msra.mxu0 0
    %1450 = vmatprep.subr.bf16.mxu0 0
    %1451 = vmatpush1.bf16.msra.mxu0 0
    %1452 = vmatprep.subr.bf16.mxu0 0
    %1453 = vmatpush1.bf16.msra.mxu0 0
    %1454 = vmatprep.subr.bf16.mxu0 0
    %1455 = vmatpush1.bf16.msra.mxu0 0
    %1456 = vmatprep.subr.bf16.mxu0 0
    %1457 = vmatpush1.bf16.msra.mxu0 0
    %1458 = vmatprep.subr.bf16.mxu0 0
    %1459 = vmatpush1.bf16.msra.mxu0 0
    %1460 = vmatprep.subr.bf16.mxu0 0
    %1461 = vmatpush1.bf16.msra.mxu0 0
    %1462 = vmatprep.subr.bf16.mxu0 0
    %1463 = vmatpush1.bf16.msra.mxu0 0
    %1464 = vmatprep.mubr.bf16.mxu0 0
    %1465 = vmatmul.mubr.bf16.gmra.mrb[0].mxu0 %v1430
    %v1466 = vpop.f32.mrb[0].mxu0
    %v1467 = vadd.f32 0.0, %v1466
    %v1468 = vpop.f32.mrb[0].mxu0
    %v1469 = vpop.f32.mrb[0].mxu0
    %v1470 = vadd.f32 0.0, %v1469
    %v1471 = vpop.f32.mrb[0].mxu0
    %1472 = vdwg.mxu0
    %v1473 = vtanh.pop %v1467
    %v1474 = vtanh.pop %v1470
    %v1475 = vpack.c.bf16 %v1473, %v1473
    %v1476 = vpack.c.bf16 %v1474, %v1474
    %1477 = vst [vmem:[#allocation16] sm:$0xf] %v1475
    %1478 = vst [vmem:[#allocation16 + $0x4] sm:$0xf] %v1476
    // Predicated region
    $region82: #{tpu_custom_call.1} parent=1 // pred_check
      _
    $region83: #{tpu_custom_call.1} parent=1 // pred_check_branch
      %1480 = sbr.rel (0) target = $region85
    $region84: #{tpu_custom_call.1} parent=1 // pred_region
      %s1482 = ssub.s32 128, 128
      %1483 = vsyncadd [#allocation4], %s1482
      %s1484 = sshll.u32 [#allocation16], 4
      %s1485 = int_to_ptr.vmem [resolvable:$true] %s1484
      %1490 = dma.vmem_to_hbm [thread:$0]  %s1485, 128, %s12, [#allocation4], 64, 64, 4
    $region85: #{tpu_custom_call.1} parent=1 // pred_fallthru
      _
    // Predicated region
    $region86: #{tpu_custom_call.1} parent=1 // pred_check
      _
    $region87: #{tpu_custom_call.1} parent=1 // pred_check_branch
      %1492 = sbr.rel (0) target = $region89
    $region88: #{tpu_custom_call.1} parent=1 // pred_region
      %1493 = dma.done [#allocation4], 128
    $region89: #{tpu_custom_call.1} parent=1 // pred_fallthru
      _
    %1494 = vsyncpa [#allocation3], 1
    %1495 = vsyncpa [#allocation6], 1
    %1496 = vsyncpa [#allocation9], 1
    %1497 = vsyncpa [#allocation12], 1
    %1498 = vsyncpa [#allocation15], 1
    %1499 = vsyncpa [#allocation4], 1

</llo_original>
